<compile_context>
chip_gen: v5e
topology: v5e:2x2
jax: 0.10.0
libtpu: 0.0.40
codegen_flags: <defaults>
</compile_context>

<pallas_src>
import jax
import jax.numpy as jnp
from jax import lax
from jax.experimental import pallas as pl
from jax.experimental.pallas import tpu as pltpu

_PREC = lax.Precision.HIGHEST  # tiny contraction dims -> negligible multi-pass cost


def make_mvq_kernel(K):
    def kernel(z_ref, win_ref, bin_ref, cb_ref, cbn_ref, wout_ref, bout_ref,
               zq_ref, codes_ref, lat_ref, sse_ref):
        z = z_ref[...]            # [D,  TM]   (tokens on lanes)
        w_in = win_ref[...]       # [cd, D]
        b_in = bin_ref[...]       # [cd, 1]
        cb = cb_ref[...]          # [K,  cd]   unnormalized codebook (for the gather)
        cb_n = cbn_ref[...]       # [K,  cd]   L2-normalized codebook (hoisted to wrapper)
        w_out = wout_ref[...]     # [D,  cd]
        b_out = bout_ref[...]     # [D,  1]

        # ---- in_proj: 1x1 WNConv1d == channel matmul ----
        z_e = lax.dot_general(w_in, z, (((1,), (0,)), ((), ())),
                              preferred_element_type=jnp.float32,
                              precision=_PREC) + b_in                  # [cd, TM]
        lat_ref[...] = z_e

        # ---- L2-normalize encodings (F.normalize, eps=1e-12 -> clamp sumsq at 1e-24) ----
        inv_norm = lax.rsqrt(jnp.maximum(
            jnp.sum(z_e * z_e, axis=0, keepdims=True), 1e-24))         # [1, TM] (EUP)
        enc_n = z_e * inv_norm                                          # [cd, TM]

        # ---- cosine similarity; argmin(dist) == argmax(dots) for normalized codes ----
        dots = lax.dot_general(cb_n, enc_n, (((1,), (0,)), ((), ())),
                               preferred_element_type=jnp.float32,
                               precision=_PREC)                        # [K, TM]
        mx = jnp.max(dots, axis=0, keepdims=True)                      # [1, TM]
        k_iota = lax.broadcasted_iota(jnp.int32, dots.shape, 0)        # [K, TM]
        idx = jnp.min(jnp.where(dots >= mx, k_iota, K),
                      axis=0, keepdims=True)                           # [1, TM] first-index argmax
        codes_ref[...] = idx

        # ---- gather z_q = codebook[idx] via exact one-hot matmul (unnormalized codebook) ----
        one_hot = (k_iota == idx).astype(jnp.float32)                  # [K, TM]
        z_q = lax.dot_general(cb, one_hot, (((0,), (0,)), ((), ())),
                              preferred_element_type=jnp.float32,
                              precision=_PREC)                         # [cd, TM]

        # ---- per-token squared error; per-batch mean finished in the wrapper ----
        diff = z_e - z_q
        sse_ref[...] = jnp.sum(diff * diff, axis=0, keepdims=True)     # [1, TM]

        # ---- straight-through (forward value == z_q), then out_proj 1x1 WNConv1d ----
        zq_ref[...] = lax.dot_general(w_out, z_q, (((1,), (0,)), ((), ())),
                                      preferred_element_type=jnp.float32,
                                      precision=_PREC) + b_out         # [D, TM]

    return kernel


def mvq_forward(z_bdt, W_in, b_in, Cb, W_out, b_out, *, tm=512):
    """Eval-mode MultiscaleVectorQuantize.forward (scale=None, conv=None).

    Returns (z_q [B,D,T], commitment_loss [B], codebook_loss [B],
             indices [B,T] int32, z_e [B,cd,T]).
    Raise `tm` (e.g. 512-1024) for long sequences; it only needs to keep the
    (D+cd+2, tm) f32 working set comfortably inside VMEM (trivially true here).
    """
    B, D, T = z_bdt.shape
    cd = W_in.shape[0]
    K = Cb.shape[0]
    M = B * T

    # tokens-last 2-D layout:  z_dm[d, b*T + t] = z[b, d, t]
    z_dm = jnp.transpose(z_bdt, (1, 0, 2)).reshape(D, M).astype(jnp.float32)

    grid_m = pl.cdiv(M, tm)
    M_pad = grid_m * tm
    if M_pad != M:
        z_dm = jnp.pad(z_dm, ((0, 0), (0, M_pad - M)))

    # hoisted codebook L2 normalization (per-codeword constant)
    Cb = Cb.astype(jnp.float32)
    Cb_n = Cb * lax.rsqrt(jnp.maximum(jnp.sum(Cb * Cb, axis=1, keepdims=True), 1e-24))

    W_in = W_in.astype(jnp.float32)
    W_out = W_out.astype(jnp.float32)
    b_in2 = b_in.astype(jnp.float32).reshape(cd, 1)
    b_out2 = b_out.astype(jnp.float32).reshape(D, 1)

    kernel = make_mvq_kernel(K)
    out_shape = (
        jax.ShapeDtypeStruct((D, M_pad), jnp.float32),   # out_proj(z_q), tokens-last
        jax.ShapeDtypeStruct((1, M_pad), jnp.int32),     # codebook indices (lane-dense)
        jax.ShapeDtypeStruct((cd, M_pad), jnp.float32),  # latents z_e (lane-dense)
        jax.ShapeDtypeStruct((1, M_pad), jnp.float32),   # per-token squared error
    )
    grid_spec = pltpu.PrefetchScalarGridSpec(
        num_scalar_prefetch=0,
        grid=(grid_m,),
        in_specs=[
            pl.BlockSpec((D, tm), lambda i: (0, i)),      # z tile
            pl.BlockSpec((cd, D), lambda i: (0, 0)),      # W_in   (resident)
            pl.BlockSpec((cd, 1), lambda i: (0, 0)),      # b_in   (resident)
            pl.BlockSpec((K, cd), lambda i: (0, 0)),      # codebook (resident)
            pl.BlockSpec((K, cd), lambda i: (0, 0)),      # normalized codebook (resident)
            pl.BlockSpec((D, cd), lambda i: (0, 0)),      # W_out  (resident)
            pl.BlockSpec((D, 1), lambda i: (0, 0)),       # b_out  (resident)
        ],
        out_specs=[
            pl.BlockSpec((D, tm), lambda i: (0, i)),
            pl.BlockSpec((1, tm), lambda i: (0, i)),
            pl.BlockSpec((cd, tm), lambda i: (0, i)),
            pl.BlockSpec((1, tm), lambda i: (0, i)),
        ],
    )

    zq_dm, codes_row, lat_cm, sse_row = pl.pallas_call(
        kernel,
        out_shape=out_shape,
        grid_spec=grid_spec,
        compiler_params=pltpu.CompilerParams(dimension_semantics=("parallel",)),
    )(z_dm, W_in, b_in2, Cb, Cb_n, W_out, b_out2)

    zq_dm = zq_dm[:, :M]
    codes = codes_row[0, :M]
    lat_cm = lat_cm[:, :M]
    sse = sse_row[0, :M]

    z_q = jnp.transpose(zq_dm.reshape(D, B, T), (1, 0, 2))          # [B, D, T]
    indices = codes.reshape(B, T)                                   # [B, T]
    z_e = jnp.transpose(lat_cm.reshape(cd, B, T), (1, 0, 2))        # [B, cd, T]
    loss = jnp.sum(sse.reshape(B, T), axis=1) / float(cd * T)       # [B]
    # commitment_loss and codebook_loss have identical forward values (grads differ only)
    return z_q, loss, loss, indices, z_e


def mvq_reference(z, W_in, b_in, Cb, W_out, b_out):
    """Pure-JAX reference mirroring the PyTorch forward (eval, scale=None, conv=None)."""
    B, D, T = z.shape
    cd = W_in.shape[0]
    z_e = jnp.einsum('cd,bdt->bct', W_in, z, precision=_PREC) + b_in[None, :, None]
    enc = jnp.transpose(z_e, (0, 2, 1)).reshape(B * T, cd)
    encn = enc / jnp.maximum(jnp.linalg.norm(enc, axis=1, keepdims=True), 1e-12)
    cbn = Cb / jnp.maximum(jnp.linalg.norm(Cb, axis=1, keepdims=True), 1e-12)
    dist = ((encn ** 2).sum(1, keepdims=True)
            - 2.0 * jnp.dot(encn, cbn.T, precision=_PREC)
            + (cbn ** 2).sum(1)[None, :])
    idx = jnp.argmin(dist, axis=1)                                   # (-dist).max(1)[1]
    z_q_bct = jnp.transpose(Cb[idx].reshape(B, T, cd), (0, 2, 1))    # [B, cd, T]
    commitment = jnp.mean((z_e - z_q_bct) ** 2, axis=(1, 2))         # [B]
    out = jnp.einsum('dc,bct->bdt', W_out, z_q_bct, precision=_PREC) + b_out[None, :, None]
    return out, commitment, commitment, idx.reshape(B, T), z_e


if __name__ == "__main__":
    # Small shapes consistent with the module: input_dim=32, codebook_size=64,
    # codebook_dim=8, batch=2, seq=128 (two 128-token tiles on the parallel grid).
    B, D, T = 2, 32, 128
    K, cd = 64, 8

    key = jax.random.PRNGKey(0)
    ks = jax.random.split(key, 8)

    # WNConv1d(in -> out, kernel_size=1): effective weight = g * v / ||v|| per out-channel
    v_in = jax.random.normal(ks[0], (cd, D), jnp.float32) * 0.3
    g_in = jax.random.uniform(ks[1], (cd, 1), jnp.float32, minval=0.5, maxval=1.5)
    W_in = g_in * v_in / jnp.linalg.norm(v_in, axis=1, keepdims=True)
    b_in = jax.random.normal(ks[2], (cd,), jnp.float32) * 0.1

    Cb = jax.random.normal(ks[3], (K, cd), jnp.float32)              # nn.Embedding weights

    v_out = jax.random.normal(ks[4], (D, cd), jnp.float32) * 0.3
    g_out = jax.random.uniform(ks[5], (D, 1), jnp.float32, minval=0.5, maxval=1.5)
    W_out = g_out * v_out / jnp.linalg.norm(v_out, axis=1, keepdims=True)
    b_out = jax.random.normal(ks[6], (D,), jnp.float32) * 0.1

    z = jax.random.normal(ks[7], (B, D, T), jnp.float32)

    # TODO(synk): the scale-dependent F.interpolate / avg_pool pooling path and the
    # optional `conv` argument are not implemented (scale=None, conv=None eval path only).
    out = mvq_forward(z, W_in, b_in, Cb, W_out, b_out, tm=128)
    out = jax.block_until_ready(out)
    z_q, commit, cbloss, indices, z_e = out

    z_q_r, commit_r, _, idx_r, z_e_r = mvq_reference(z, W_in, b_in, Cb, W_out, b_out)

    assert z_q.shape == (B, D, T)
    assert indices.shape == (B, T)
    assert z_e.shape == (B, cd, T)
    assert commit.shape == (B,)
    assert float(jnp.max(jnp.abs(z_q - z_q_r))) < 1e-3
    assert float(jnp.max(jnp.abs(z_e - z_e_r))) < 1e-3
    assert bool(jnp.all(indices == idx_r.astype(jnp.int32)))
    assert float(jnp.max(jnp.abs(commit - commit_r))) < 1e-3

    print("KERNEL_OK")
</pallas_src>

<mosaic_0001>
module attributes {stable_mosaic.version = 11 : i64} {
  func.func @kernel(%arg0: i32, %arg1: memref<32x128xf32, #tpu.memory_space<vmem>>, %arg2: memref<8x32xf32, #tpu.memory_space<vmem>>, %arg3: memref<8x1xf32, #tpu.memory_space<vmem>>, %arg4: memref<64x8xf32, #tpu.memory_space<vmem>>, %arg5: memref<64x8xf32, #tpu.memory_space<vmem>>, %arg6: memref<32x8xf32, #tpu.memory_space<vmem>>, %arg7: memref<32x1xf32, #tpu.memory_space<vmem>>, %arg8: memref<32x128xf32, #tpu.memory_space<vmem>>, %arg9: memref<1x128xi32, #tpu.memory_space<vmem>>, %arg10: memref<8x128xf32, #tpu.memory_space<vmem>>, %arg11: memref<1x128xf32, #tpu.memory_space<vmem>>) attributes {dimension_semantics = [#tpu.dimension_semantics<parallel>], iteration_bounds = array<i64: 2>, scalar_prefetch = 0 : i64, scratch_operands = 0 : i64, tpu.core_type = #tpu.core_type<tc>, window_params = [{transform_indices = @transform_0, window_bounds = array<i64: 32, 128>}, {pipeline_mode = #tpu.pipeline_mode<synchronous>, transform_indices = @transform_1, window_bounds = array<i64: 8, 32>}, {pipeline_mode = #tpu.pipeline_mode<synchronous>, transform_indices = @transform_2, window_bounds = array<i64: 8, 1>}, {pipeline_mode = #tpu.pipeline_mode<synchronous>, transform_indices = @transform_3, window_bounds = array<i64: 64, 8>}, {pipeline_mode = #tpu.pipeline_mode<synchronous>, transform_indices = @transform_4, window_bounds = array<i64: 64, 8>}, {pipeline_mode = #tpu.pipeline_mode<synchronous>, transform_indices = @transform_5, window_bounds = array<i64: 32, 8>}, {pipeline_mode = #tpu.pipeline_mode<synchronous>, transform_indices = @transform_6, window_bounds = array<i64: 32, 1>}, {transform_indices = @transform_7, window_bounds = array<i64: 32, 128>}, {transform_indices = @transform_8, window_bounds = array<i64: 1, 128>}, {transform_indices = @transform_9, window_bounds = array<i64: 8, 128>}, {transform_indices = @transform_10, window_bounds = array<i64: 1, 128>}]} {
    %c0 = arith.constant 0 : index
    %c0_0 = arith.constant 0 : index
    %0 = vector.load %arg1[%c0, %c0_0] : memref<32x128xf32, #tpu.memory_space<vmem>>, vector<32x128xf32>
    %c0_1 = arith.constant 0 : index
    %c0_2 = arith.constant 0 : index
    %1 = vector.load %arg2[%c0_1, %c0_2] : memref<8x32xf32, #tpu.memory_space<vmem>>, vector<8x32xf32>
    %c0_3 = arith.constant 0 : index
    %c0_4 = arith.constant 0 : index
    %2 = vector.load %arg3[%c0_3, %c0_4] : memref<8x1xf32, #tpu.memory_space<vmem>>, vector<8x1xf32>
    %c0_5 = arith.constant 0 : index
    %c0_6 = arith.constant 0 : index
    %3 = vector.load %arg4[%c0_5, %c0_6] : memref<64x8xf32, #tpu.memory_space<vmem>>, vector<64x8xf32>
    %c0_7 = arith.constant 0 : index
    %c0_8 = arith.constant 0 : index
    %4 = vector.load %arg5[%c0_7, %c0_8] : memref<64x8xf32, #tpu.memory_space<vmem>>, vector<64x8xf32>
    %c0_9 = arith.constant 0 : index
    %c0_10 = arith.constant 0 : index
    %5 = vector.load %arg6[%c0_9, %c0_10] : memref<32x8xf32, #tpu.memory_space<vmem>>, vector<32x8xf32>
    %c0_11 = arith.constant 0 : index
    %c0_12 = arith.constant 0 : index
    %6 = vector.load %arg7[%c0_11, %c0_12] : memref<32x1xf32, #tpu.memory_space<vmem>>, vector<32x1xf32>
    %cst = arith.constant dense<0.000000e+00> : vector<8x128xf32>
    %7 = tpu.matmul %1, %0, %cst {dimension_numbers = #tpu.dot_dimension_numbers<[1], [0], [0], [1], [0, 0, 1, 1], [], []>, precision = #tpu.contract_precision<fp32>} : vector<8x32xf32>, vector<32x128xf32>, vector<8x128xf32> -> vector<8x128xf32>
    %8 = vector.broadcast %2 : vector<8x1xf32> to vector<8x128xf32>
    %9 = arith.addf %7, %8 : vector<8x128xf32>
    %c0_13 = arith.constant 0 : index
    %c0_14 = arith.constant 0 : index
    %10 = vector.load %arg10[%c0_13, %c0_14] : memref<8x128xf32, #tpu.memory_space<vmem>>, vector<8x128xf32>
    tpu.vector_store %arg10[%c0_13, %c0_14], %9 {strides = array<i32>} : memref<8x128xf32, #tpu.memory_space<vmem>>, vector<8x128xf32>,
    %11 = arith.mulf %9, %9 : vector<8x128xf32>
    %cst_15 = arith.constant dense<0.000000e+00> : vector<128xf32>
    %12 = vector.multi_reduction <add>, %11, %cst_15 [0] : vector<8x128xf32> to vector<128xf32>
    %13 = vector.shape_cast %12 : vector<128xf32> to vector<1x128xf32>
    %cst_16 = arith.constant 1.000000e-24 : f32
    %14 = vector.broadcast %cst_16 : f32 to vector<1x128xf32>
    %15 = arith.maximumf %13, %14 : vector<1x128xf32>
    %16 = math.rsqrt %15 : vector<1x128xf32>
    %17 = vector.broadcast %16 : vector<1x128xf32> to vector<8x128xf32>
    %18 = arith.mulf %9, %17 : vector<8x128xf32>
    %cst_17 = arith.constant dense<0.000000e+00> : vector<64x128xf32>
    %19 = tpu.matmul %4, %18, %cst_17 {dimension_numbers = #tpu.dot_dimension_numbers<[1], [0], [0], [1], [0, 0, 1, 1], [], []>, precision = #tpu.contract_precision<fp32>} : vector<64x8xf32>, vector<8x128xf32>, vector<64x128xf32> -> vector<64x128xf32>
    %cst_18 = arith.constant dense<0xFF800000> : vector<128xf32>
    %20 = vector.multi_reduction <maximumf>, %19, %cst_18 [0] : vector<64x128xf32> to vector<128xf32>
    %21 = vector.shape_cast %20 : vector<128xf32> to vector<1x128xf32>
    %22 = tpu.iota {dimensions = array<i32: 0>} : vector<64x128xi32>
    %23 = vector.broadcast %21 : vector<1x128xf32> to vector<64x128xf32>
    %24 = arith.cmpf oge, %19, %23 : vector<64x128xf32>
    %c64_i32 = arith.constant 64 : i32
    %25 = vector.broadcast %c64_i32 : i32 to vector<64x128xi32>
    %26 = arith.select %24, %22, %25 : vector<64x128xi1>, vector<64x128xi32>
    %cst_19 = arith.constant dense<2147483647> : vector<128xi32>
    %27 = vector.multi_reduction <minsi>, %26, %cst_19 [0] : vector<64x128xi32> to vector<128xi32>
    %28 = vector.shape_cast %27 : vector<128xi32> to vector<1x128xi32>
    %c0_20 = arith.constant 0 : index
    %c0_21 = arith.constant 0 : index
    %29 = vector.load %arg9[%c0_20, %c0_21] : memref<1x128xi32, #tpu.memory_space<vmem>>, vector<1x128xi32>
    tpu.vector_store %arg9[%c0_20, %c0_21], %28 {strides = array<i32>} : memref<1x128xi32, #tpu.memory_space<vmem>>, vector<1x128xi32>,
    %30 = vector.broadcast %28 : vector<1x128xi32> to vector<64x128xi32>
    %31 = arith.cmpi eq, %22, %30 : vector<64x128xi32>
    %32 = arith.extui %31 : vector<64x128xi1> to vector<64x128xi32>
    %33 = arith.sitofp %32 : vector<64x128xi32> to vector<64x128xf32>
    %cst_22 = arith.constant dense<0.000000e+00> : vector<8x128xf32>
    %34 = tpu.matmul %3, %33, %cst_22 {dimension_numbers = #tpu.dot_dimension_numbers<[0], [0], [1], [1], [0, 1, 1, 1], [], []>, precision = #tpu.contract_precision<fp32>} : vector<64x8xf32>, vector<64x128xf32>, vector<8x128xf32> -> vector<8x128xf32>
    %35 = arith.subf %9, %34 : vector<8x128xf32>
    %36 = arith.mulf %35, %35 : vector<8x128xf32>
    %cst_23 = arith.constant dense<0.000000e+00> : vector<128xf32>
    %37 = vector.multi_reduction <add>, %36, %cst_23 [0] : vector<8x128xf32> to vector<128xf32>
    %38 = vector.shape_cast %37 : vector<128xf32> to vector<1x128xf32>
    %c0_24 = arith.constant 0 : index
    %c0_25 = arith.constant 0 : index
    %39 = vector.load %arg11[%c0_24, %c0_25] : memref<1x128xf32, #tpu.memory_space<vmem>>, vector<1x128xf32>
    tpu.vector_store %arg11[%c0_24, %c0_25], %38 {strides = array<i32>} : memref<1x128xf32, #tpu.memory_space<vmem>>, vector<1x128xf32>,
    %cst_26 = arith.constant dense<0.000000e+00> : vector<32x128xf32>
    %40 = tpu.matmul %5, %34, %cst_26 {dimension_numbers = #tpu.dot_dimension_numbers<[1], [0], [0], [1], [0, 0, 1, 1], [], []>, precision = #tpu.contract_precision<fp32>} : vector<32x8xf32>, vector<8x128xf32>, vector<32x128xf32> -> vector<32x128xf32>
    %41 = vector.broadcast %6 : vector<32x1xf32> to vector<32x128xf32>
    %42 = arith.addf %40, %41 : vector<32x128xf32>
    %c0_27 = arith.constant 0 : index
    %c0_28 = arith.constant 0 : index
    %43 = vector.load %arg8[%c0_27, %c0_28] : memref<32x128xf32, #tpu.memory_space<vmem>>, vector<32x128xf32>
    tpu.vector_store %arg8[%c0_27, %c0_28], %42 {strides = array<i32>} : memref<32x128xf32, #tpu.memory_space<vmem>>, vector<32x128xf32>,
    return
  }
  func.func @transform_0(%arg0: i32) -> (i32, i32) {
    %c0_i32 = arith.constant 0 : i32
    %c0_i32_0 = arith.constant 0 : i32
    return %c0_i32, %arg0 : i32, i32
  }
  func.func @transform_1(%arg0: i32) -> (i32, i32) {
    %c0_i32 = arith.constant 0 : i32
    %c0_i32_0 = arith.constant 0 : i32
    %c0_i32_1 = arith.constant 0 : i32
    return %c0_i32, %c0_i32_0 : i32, i32
  }
  func.func @transform_2(%arg0: i32) -> (i32, i32) {
    %c0_i32 = arith.constant 0 : i32
    %c0_i32_0 = arith.constant 0 : i32
    %c0_i32_1 = arith.constant 0 : i32
    return %c0_i32, %c0_i32_0 : i32, i32
  }
  func.func @transform_3(%arg0: i32) -> (i32, i32) {
    %c0_i32 = arith.constant 0 : i32
    %c0_i32_0 = arith.constant 0 : i32
    %c0_i32_1 = arith.constant 0 : i32
    return %c0_i32, %c0_i32_0 : i32, i32
  }
  func.func @transform_4(%arg0: i32) -> (i32, i32) {
    %c0_i32 = arith.constant 0 : i32
    %c0_i32_0 = arith.constant 0 : i32
    %c0_i32_1 = arith.constant 0 : i32
    return %c0_i32, %c0_i32_0 : i32, i32
  }
  func.func @transform_5(%arg0: i32) -> (i32, i32) {
    %c0_i32 = arith.constant 0 : i32
    %c0_i32_0 = arith.constant 0 : i32
    %c0_i32_1 = arith.constant 0 : i32
    return %c0_i32, %c0_i32_0 : i32, i32
  }
  func.func @transform_6(%arg0: i32) -> (i32, i32) {
    %c0_i32 = arith.constant 0 : i32
    %c0_i32_0 = arith.constant 0 : i32
    %c0_i32_1 = arith.constant 0 : i32
    return %c0_i32, %c0_i32_0 : i32, i32
  }
  func.func @transform_7(%arg0: i32) -> (i32, i32) {
    %c0_i32 = arith.constant 0 : i32
    %c0_i32_0 = arith.constant 0 : i32
    return %c0_i32, %arg0 : i32, i32
  }
  func.func @transform_8(%arg0: i32) -> (i32, i32) {
    %c0_i32 = arith.constant 0 : i32
    %c0_i32_0 = arith.constant 0 : i32
    return %c0_i32, %arg0 : i32, i32
  }
  func.func @transform_9(%arg0: i32) -> (i32, i32) {
    %c0_i32 = arith.constant 0 : i32
    %c0_i32_0 = arith.constant 0 : i32
    return %c0_i32, %arg0 : i32, i32
  }
  func.func @transform_10(%arg0: i32) -> (i32, i32) {
    %c0_i32 = arith.constant 0 : i32
    %c0_i32_0 = arith.constant 0 : i32
    return %c0_i32, %arg0 : i32, i32
  }
}

</mosaic_0001>

<llo_original>
// kernel: tpu_custom_call.1
$region0: #{tpu_custom_call.1}
  #allocation0 [shape = 'u32[]', space=smem, size = 0x4, offset = 0x4, fixed_abs, tag = 'smem constant byte address 0x4 - core index']
  #allocation1 [shape = 'u32[72,128]{1,0:T(1,128)}', space=vmem, size = 0x9000, scoped, tag = 'internal scratch']
  %s0 = inlined_call_operand.vmem [shape: f32[32,256], index: 0, kind: input, shape index: {}]
  %s1 = inlined_call_operand.vmem [shape: f32[8,32], index: 1, kind: input, shape index: {}]
  %s2 = inlined_call_operand.vmem [shape: f32[8,1], index: 2, kind: input, shape index: {}]
  %s3 = inlined_call_operand.vmem [shape: f32[64,8], index: 3, kind: input, shape index: {}]
  %s4 = inlined_call_operand.vmem [shape: f32[64,8], index: 4, kind: input, shape index: {}]
  %s5 = inlined_call_operand.vmem [shape: f32[32,8], index: 5, kind: input, shape index: {}]
  %s6 = inlined_call_operand.vmem [shape: f32[32,1], index: 6, kind: input, shape index: {}]
  %s7 = inlined_call_operand.hbm [shape: f32[32,256], index: 7, kind: output, shape index: {0}]
  %s8 = inlined_call_operand.hbm [shape: s32[1,256], index: 8, kind: output, shape index: {1}]
  %s9 = inlined_call_operand.hbm [shape: f32[8,256], index: 9, kind: output, shape index: {2}]
  %s10 = inlined_call_operand.hbm [shape: f32[1,256], index: 10, kind: output, shape index: {3}]
  %11 = xla_tuple %s7, %s8, %s9, %s10
  %s12 = sld [smem:[#allocation0]]
  $region123: #{tpu_custom_call.1} parent=0
    _
  %s14 = ssub.s32 1, %s12
  %s15 = scalar_select 0, %s14, %s12
  $region1: #{tpu_custom_call.1} parent=0
    #allocation2 [shape = 'u8[32768]{0}', space=vmem, size = 0x8000, scoped, tag = 'input window, operand 0']
    #allocation3 [shape = 'u8[32768]{0}', space=vmem, size = 0x8000, scoped, tag = 'output window, operand 0']
    #allocation4 [shape = 's32[2]{0}', space=sflag, size = 0x8, scoped, tag = 'scoped memory for tpu_custom_call.1']
    #allocation5 [shape = 'u8[1024]{0}', space=vmem, size = 0x400, scoped, tag = 'output window, operand 1']
    #allocation6 [shape = 's32[2]{0}', space=sflag, size = 0x8, scoped, tag = 'scoped memory for tpu_custom_call.1']
    #allocation7 [shape = 'u8[8192]{0}', space=vmem, size = 0x2000, scoped, tag = 'output window, operand 2']
    #allocation8 [shape = 'u8[1024]{0}', space=vmem, size = 0x400, scoped, tag = 'output window, operand 3']
    #allocation9 [shape = 's32[2]{0}', space=sflag, size = 0x8, scoped, tag = 'scoped memory for tpu_custom_call.1']
    %16 = vsyncpa [#allocation4], 0
    %s17 = scalar_lea.sflag [#allocation4], 1
    %18 = vsyncpa %s17, 0
    %19 = vsyncpa [#allocation6], 0
    %s20 = scalar_lea.sflag [#allocation6], 1
    %21 = vsyncpa %s20, 0
    %22 = vsyncpa [#allocation9], 0
    %s23 = scalar_lea.sflag [#allocation9], 1
    %24 = vsyncpa %s23, 0
    loop: start=0, step=1, limit=4
    $region2: #{tpu_custom_call.1} parent=1 // loop_pre_header
      _
    $region3: #{tpu_custom_call.1} parent=1 // loop_header
      %s26 = sphi 0, %s30
      %p27 = scmp.ge.s32.totalorder %s26, 4
      %s36 = sphi 0, %s38
      %s39 = sphi 0, %s36
      %s40 = sphi 0, %s39
      %s56 = sphi 0, %s40
      %s60 = sphi 0, %s60
      %s62 = sphi 0, %s60
      %s63 = sphi 0, %s62
      %s77 = sphi 0, %s63
      %s81 = sphi 0, %s81
      %s83 = sphi 0, %s81
      %s84 = sphi 0, %s83
      %s98 = sphi 0, %s84
      %s102 = sphi 0, %s102
      %s104 = sphi 0, %s102
      %s105 = sphi 0, %s104
      %s119 = sphi 0, %s105
      %s123 = sphi 0, %s123
      %s125 = sphi 0, %s123
      %s126 = sphi 0, %s125
      %s140 = sphi 0, %s126
      %s144 = sphi 0, %s144
      %s146 = sphi 0, %s144
      %s147 = sphi 0, %s146
      %s161 = sphi 0, %s147
      %s165 = sphi 0, %s165
      %s167 = sphi 0, %s165
      %s168 = sphi 0, %s167
      %s182 = sphi 0, %s168
      %s188 = sphi 0, %s190
      %s191 = sphi 0, %s188
      %s192 = sphi 0, %s191
      %s208 = sphi 0, %s192
      %s214 = sphi 0, %s216
      %s217 = sphi 0, %s214
      %s218 = sphi 0, %s217
      %s234 = sphi 0, %s218
      %s240 = sphi 0, %s242
      %s243 = sphi 0, %s240
      %s244 = sphi 0, %s243
      %s260 = sphi 0, %s244
      %s266 = sphi 0, %s268
      %s269 = sphi 0, %s266
      %s270 = sphi 0, %s269
      %s286 = sphi 0, %s270
    $region4: #{tpu_custom_call.1} parent=1 // loop_header_branch
      %29 = sbr.rel (%p27) target = $region8
    $region5: #{tpu_custom_call.1} parent=1 // loop_body
      %s31 = ssub.s32 %s26, 1
      %s32 = ssub.s32 %s26, 2
      %s33 = sadd.s32 %s26, 1
      %s34 = ssub.s32 %s26, %s33
      %p35 = scmp.eq.s32.totalorder %s34, 0
      %s37 = sadd.s32 %s36, 1
      %s38 = scalar_select %p35, %s36, %s37
      %p41 = pneg %p35
      %p42 = scmp.eq.s32.totalorder %s26, 1
      %p43 = por %p41, %p42
      %p44 = scmp.ne.s32.totalorder %s36, %s39
      %p45 = scmp.eq.s32.totalorder %s26, 0
      %p46 = por %p44, %p45
      %p47 = scmp.ne.s32.totalorder %s36, %s39
      %p48 = scmp.eq.s32.totalorder %s31, 1
      %p49 = por %p47, %p48
      %p50 = scmp.ne.s32.totalorder %s39, %s40
      %p51 = scmp.eq.s32.totalorder %s31, 0
      %p52 = por %p50, %p51
      %p53 = scmp.ne.s32.totalorder %s39, %s40
      %p54 = scmp.eq.s32.totalorder %s32, 1
      %p55 = por %p53, %p54
      %p57 = scmp.ne.s32.totalorder %s40, %s56
      %p58 = scmp.eq.s32.totalorder %s32, 0
      %p59 = por %p57, %p58
      %s61 = sadd.s32 %s60, 1
      %p64 = scmp.eq.s32.totalorder %s26, 1
      %p65 = scmp.ne.s32.totalorder %s60, %s62
      %p66 = scmp.eq.s32.totalorder %s26, 0
      %p67 = por %p65, %p66
      %p68 = scmp.ne.s32.totalorder %s60, %s62
      %p69 = scmp.eq.s32.totalorder %s31, 1
      %p70 = por %p68, %p69
      %p71 = scmp.ne.s32.totalorder %s62, %s63
      %p72 = scmp.eq.s32.totalorder %s31, 0
      %p73 = por %p71, %p72
      %p74 = scmp.ne.s32.totalorder %s62, %s63
      %p75 = scmp.eq.s32.totalorder %s32, 1
      %p76 = por %p74, %p75
      %p78 = scmp.ne.s32.totalorder %s63, %s77
      %p79 = scmp.eq.s32.totalorder %s32, 0
      %p80 = por %p78, %p79
      %s82 = sadd.s32 %s81, 1
      %p85 = scmp.eq.s32.totalorder %s26, 1
      %p86 = scmp.ne.s32.totalorder %s81, %s83
      %p87 = scmp.eq.s32.totalorder %s26, 0
      %p88 = por %p86, %p87
      %p89 = scmp.ne.s32.totalorder %s81, %s83
      %p90 = scmp.eq.s32.totalorder %s31, 1
      %p91 = por %p89, %p90
      %p92 = scmp.ne.s32.totalorder %s83, %s84
      %p93 = scmp.eq.s32.totalorder %s31, 0
      %p94 = por %p92, %p93
      %p95 = scmp.ne.s32.totalorder %s83, %s84
      %p96 = scmp.eq.s32.totalorder %s32, 1
      %p97 = por %p95, %p96
      %p99 = scmp.ne.s32.totalorder %s84, %s98
      %p100 = scmp.eq.s32.totalorder %s32, 0
      %p101 = por %p99, %p100
      %s103 = sadd.s32 %s102, 1
      %p106 = scmp.eq.s32.totalorder %s26, 1
      %p107 = scmp.ne.s32.totalorder %s102, %s104
      %p108 = scmp.eq.s32.totalorder %s26, 0
      %p109 = por %p107, %p108
      %p110 = scmp.ne.s32.totalorder %s102, %s104
      %p111 = scmp.eq.s32.totalorder %s31, 1
      %p112 = por %p110, %p111
      %p113 = scmp.ne.s32.totalorder %s104, %s105
      %p114 = scmp.eq.s32.totalorder %s31, 0
      %p115 = por %p113, %p114
      %p116 = scmp.ne.s32.totalorder %s104, %s105
      %p117 = scmp.eq.s32.totalorder %s32, 1
      %p118 = por %p116, %p117
      %p120 = scmp.ne.s32.totalorder %s105, %s119
      %p121 = scmp.eq.s32.totalorder %s32, 0
      %p122 = por %p120, %p121
      %s124 = sadd.s32 %s123, 1
      %p127 = scmp.eq.s32.totalorder %s26, 1
      %p128 = scmp.ne.s32.totalorder %s123, %s125
      %p129 = scmp.eq.s32.totalorder %s26, 0
      %p130 = por %p128, %p129
      %p131 = scmp.ne.s32.totalorder %s123, %s125
      %p132 = scmp.eq.s32.totalorder %s31, 1
      %p133 = por %p131, %p132
      %p134 = scmp.ne.s32.totalorder %s125, %s126
      %p135 = scmp.eq.s32.totalorder %s31, 0
      %p136 = por %p134, %p135
      %p137 = scmp.ne.s32.totalorder %s125, %s126
      %p138 = scmp.eq.s32.totalorder %s32, 1
      %p139 = por %p137, %p138
      %p141 = scmp.ne.s32.totalorder %s126, %s140
      %p142 = scmp.eq.s32.totalorder %s32, 0
      %p143 = por %p141, %p142
      %s145 = sadd.s32 %s144, 1
      %p148 = scmp.eq.s32.totalorder %s26, 1
      %p149 = scmp.ne.s32.totalorder %s144, %s146
      %p150 = scmp.eq.s32.totalorder %s26, 0
      %p151 = por %p149, %p150
      %p152 = scmp.ne.s32.totalorder %s144, %s146
      %p153 = scmp.eq.s32.totalorder %s31, 1
      %p154 = por %p152, %p153
      %p155 = scmp.ne.s32.totalorder %s146, %s147
      %p156 = scmp.eq.s32.totalorder %s31, 0
      %p157 = por %p155, %p156
      %p158 = scmp.ne.s32.totalorder %s146, %s147
      %p159 = scmp.eq.s32.totalorder %s32, 1
      %p160 = por %p158, %p159
      %p162 = scmp.ne.s32.totalorder %s147, %s161
      %p163 = scmp.eq.s32.totalorder %s32, 0
      %p164 = por %p162, %p163
      %s166 = sadd.s32 %s165, 1
      %p169 = scmp.eq.s32.totalorder %s26, 1
      %p170 = scmp.ne.s32.totalorder %s165, %s167
      %p171 = scmp.eq.s32.totalorder %s26, 0
      %p172 = por %p170, %p171
      %p173 = scmp.ne.s32.totalorder %s165, %s167
      %p174 = scmp.eq.s32.totalorder %s31, 1
      %p175 = por %p173, %p174
      %p176 = scmp.ne.s32.totalorder %s167, %s168
      %p177 = scmp.eq.s32.totalorder %s31, 0
      %p178 = por %p176, %p177
      %p179 = scmp.ne.s32.totalorder %s167, %s168
      %p180 = scmp.eq.s32.totalorder %s32, 1
      %p181 = por %p179, %p180
      %p183 = scmp.ne.s32.totalorder %s168, %s182
      %p184 = scmp.eq.s32.totalorder %s32, 0
      %p185 = por %p183, %p184
      %s186 = ssub.s32 %s26, %s33
      %p187 = scmp.eq.s32.totalorder %s186, 0
      %s189 = sadd.s32 %s188, 1
      %s190 = scalar_select %p187, %s188, %s189
      %p193 = pneg %p187
      %p194 = scmp.eq.s32.totalorder %s26, 1
      %p195 = por %p193, %p194
      %p196 = scmp.ne.s32.totalorder %s188, %s191
      %p197 = scmp.eq.s32.totalorder %s26, 0
      %p198 = por %p196, %p197
      %p199 = scmp.ne.s32.totalorder %s188, %s191
      %p200 = scmp.eq.s32.totalorder %s31, 1
      %p201 = por %p199, %p200
      %p202 = scmp.ne.s32.totalorder %s191, %s192
      %p203 = scmp.eq.s32.totalorder %s31, 0
      %p204 = por %p202, %p203
      %p205 = scmp.ne.s32.totalorder %s191, %s192
      %p206 = scmp.eq.s32.totalorder %s32, 1
      %p207 = por %p205, %p206
      %p209 = scmp.ne.s32.totalorder %s192, %s208
      %p210 = scmp.eq.s32.totalorder %s32, 0
      %p211 = por %p209, %p210
      %s212 = ssub.s32 %s26, %s33
      %p213 = scmp.eq.s32.totalorder %s212, 0
      %s215 = sadd.s32 %s214, 1
      %s216 = scalar_select %p213, %s214, %s215
      %p219 = pneg %p213
      %p220 = scmp.eq.s32.totalorder %s26, 1
      %p221 = por %p219, %p220
      %p222 = scmp.ne.s32.totalorder %s214, %s217
      %p223 = scmp.eq.s32.totalorder %s26, 0
      %p224 = por %p222, %p223
      %p225 = scmp.ne.s32.totalorder %s214, %s217
      %p226 = scmp.eq.s32.totalorder %s31, 1
      %p227 = por %p225, %p226
      %p228 = scmp.ne.s32.totalorder %s217, %s218
      %p229 = scmp.eq.s32.totalorder %s31, 0
      %p230 = por %p228, %p229
      %p231 = scmp.ne.s32.totalorder %s217, %s218
      %p232 = scmp.eq.s32.totalorder %s32, 1
      %p233 = por %p231, %p232
      %p235 = scmp.ne.s32.totalorder %s218, %s234
      %p236 = scmp.eq.s32.totalorder %s32, 0
      %p237 = por %p235, %p236
      %s238 = ssub.s32 %s26, %s33
      %p239 = scmp.eq.s32.totalorder %s238, 0
      %s241 = sadd.s32 %s240, 1
      %s242 = scalar_select %p239, %s240, %s241
      %p245 = pneg %p239
      %p246 = scmp.eq.s32.totalorder %s26, 1
      %p247 = por %p245, %p246
      %p248 = scmp.ne.s32.totalorder %s240, %s243
      %p249 = scmp.eq.s32.totalorder %s26, 0
      %p250 = por %p248, %p249
      %p251 = scmp.ne.s32.totalorder %s240, %s243
      %p252 = scmp.eq.s32.totalorder %s31, 1
      %p253 = por %p251, %p252
      %p254 = scmp.ne.s32.totalorder %s243, %s244
      %p255 = scmp.eq.s32.totalorder %s31, 0
      %p256 = por %p254, %p255
      %p257 = scmp.ne.s32.totalorder %s243, %s244
      %p258 = scmp.eq.s32.totalorder %s32, 1
      %p259 = por %p257, %p258
      %p261 = scmp.ne.s32.totalorder %s244, %s260
      %p262 = scmp.eq.s32.totalorder %s32, 0
      %p263 = por %p261, %p262
      %s264 = ssub.s32 %s26, %s33
      %p265 = scmp.eq.s32.totalorder %s264, 0
      %s267 = sadd.s32 %s266, 1
      %s268 = scalar_select %p265, %s266, %s267
      %p271 = pneg %p265
      %p272 = scmp.eq.s32.totalorder %s26, 1
      %p273 = por %p271, %p272
      %p274 = scmp.ne.s32.totalorder %s266, %s269
      %p275 = scmp.eq.s32.totalorder %s26, 0
      %p276 = por %p274, %p275
      %p277 = scmp.ne.s32.totalorder %s266, %s269
      %p278 = scmp.eq.s32.totalorder %s31, 1
      %p279 = por %p277, %p278
      %p280 = scmp.ne.s32.totalorder %s269, %s270
      %p281 = scmp.eq.s32.totalorder %s31, 0
      %p282 = por %p280, %p281
      %p283 = scmp.ne.s32.totalorder %s269, %s270
      %p284 = scmp.eq.s32.totalorder %s32, 1
      %p285 = por %p283, %p284
      %p287 = scmp.ne.s32.totalorder %s270, %s286
      %p288 = scmp.eq.s32.totalorder %s32, 0
      %p289 = por %p287, %p288
      %p290 = scmp.le.s32.totalorder 1, %s26
      %p291 = scmp.lt.s32.totalorder %s26, 3
      %p292 = pnand %p290, %p291
      %p293 = pneg %p292
      // Predicated region
      $region9: #{tpu_custom_call.1} parent=5 // pred_check
        _
      $region10: #{tpu_custom_call.1} parent=5 // pred_check_branch
        %295 = sbr.rel (%p292) target = $region12
      $region11: #{tpu_custom_call.1} parent=5 // pred_region
        %s296 = ssub.s32 %s26, 1
        // Predicated region
        $region13: #{tpu_custom_call.1} parent=11 // pred_check
          %p297 = pneg %p73
        $region14: #{tpu_custom_call.1} parent=11 // pred_check_branch
          %299 = sbr.rel (%p297) target = $region16
        $region15: #{tpu_custom_call.1} parent=11 // pred_region
          _
        $region16: #{tpu_custom_call.1} parent=11 // pred_fallthru
          _
        // Predicated region
        $region17: #{tpu_custom_call.1} parent=11 // pred_check
          %p300 = pneg %p94
        $region18: #{tpu_custom_call.1} parent=11 // pred_check_branch
          %302 = sbr.rel (%p300) target = $region20
        $region19: #{tpu_custom_call.1} parent=11 // pred_region
          _
        $region20: #{tpu_custom_call.1} parent=11 // pred_fallthru
          _
        // Predicated region
        $region21: #{tpu_custom_call.1} parent=11 // pred_check
          %p303 = pneg %p115
        $region22: #{tpu_custom_call.1} parent=11 // pred_check_branch
          %305 = sbr.rel (%p303) target = $region24
        $region23: #{tpu_custom_call.1} parent=11 // pred_region
          _
        $region24: #{tpu_custom_call.1} parent=11 // pred_fallthru
          _
        // Predicated region
        $region25: #{tpu_custom_call.1} parent=11 // pred_check
          %p306 = pneg %p136
        $region26: #{tpu_custom_call.1} parent=11 // pred_check_branch
          %308 = sbr.rel (%p306) target = $region28
        $region27: #{tpu_custom_call.1} parent=11 // pred_region
          _
        $region28: #{tpu_custom_call.1} parent=11 // pred_fallthru
          _
        // Predicated region
        $region29: #{tpu_custom_call.1} parent=11 // pred_check
          %p309 = pneg %p157
        $region30: #{tpu_custom_call.1} parent=11 // pred_check_branch
          %311 = sbr.rel (%p309) target = $region32
        $region31: #{tpu_custom_call.1} parent=11 // pred_region
          _
        $region32: #{tpu_custom_call.1} parent=11 // pred_fallthru
          _
        // Predicated region
        $region33: #{tpu_custom_call.1} parent=11 // pred_check
          %p312 = pneg %p178
        $region34: #{tpu_custom_call.1} parent=11 // pred_check_branch
          %314 = sbr.rel (%p312) target = $region36
        $region35: #{tpu_custom_call.1} parent=11 // pred_region
          _
        $region36: #{tpu_custom_call.1} parent=11 // pred_fallthru
          _
      $region12: #{tpu_custom_call.1} parent=5 // pred_fallthru
        _
      %p315 = scmp.lt.s32.totalorder %s26, 2
      // Predicated region
      $region37: #{tpu_custom_call.1} parent=5 // pred_check
        %p316 = pneg %p315
      $region38: #{tpu_custom_call.1} parent=5 // pred_check_branch
        %318 = sbr.rel (%p316) target = $region40
      $region39: #{tpu_custom_call.1} parent=5 // pred_region
        // Predicated region
        $region41: #{tpu_custom_call.1} parent=39 // pred_check
          %p319 = pneg %p46
        $region42: #{tpu_custom_call.1} parent=39 // pred_check_branch
          %321 = sbr.rel (%p319) target = $region44
        $region43: #{tpu_custom_call.1} parent=39 // pred_region
          %s322 = sand.u32 %s36, 1
          %s323 = sand.u32 %s36, 1
          %s324 = smul.addr %s323, 32
          %s325 = scalar_lea.vmem [#allocation2], %s324
          %s326 = smul.addr %s26, 8
          %s327 = scalar_lea.vmem %s0, %s326
          // Predicated region
          $region45: #{tpu_custom_call.1} parent=43 // pred_check
            _
          $region46: #{tpu_custom_call.1} parent=43 // pred_check_branch
            %329 = sbr.rel (0) target = $region48
          $region47: #{tpu_custom_call.1} parent=43 // pred_region
            // Predicated region
            $region49: #{tpu_custom_call.1} parent=47 // pred_check
              _
            $region50: #{tpu_custom_call.1} parent=47 // pred_check_branch
              %331 = sbr.rel (0) target = $region52
            $region51: #{tpu_custom_call.1} parent=47 // pred_region
              // Predicated region
              $region64: #{tpu_custom_call.1} parent=51 // pred_check
                _
              $region65: #{tpu_custom_call.1} parent=51 // pred_check_branch
                %353 = sbr.rel (0) target = $region67
              $region66: #{tpu_custom_call.1} parent=51 // pred_region
                loop: start=0, step=1, limit=1
                $region68: #{tpu_custom_call.1} parent=66 // loop_pre_header
                  _
                $region69: #{tpu_custom_call.1} parent=66 // loop_header
                  %s355 = sphi 0, %s359
                  %p356 = scmp.ge.s32.totalorder %s355, 1
                  %s360 = sphi %s327, %s327
                  %s361 = sphi %s325, %s325
                $region70: #{tpu_custom_call.1} parent=66 // loop_header_branch
                  %358 = sbr.rel (%p356) target = $region74
                $region71: #{tpu_custom_call.1} parent=66 // loop_body
                  %v362 = vld [vmem:[%s360] sm:$0xff]
                  %363 = vst [vmem:[%s361] sm:$0xff] %v362
                  %v364 = vld [vmem:[%s360 + $0x10] sm:$0xff]
                  %365 = vst [vmem:[%s361 + $0x8] sm:$0xff] %v364
                  %v366 = vld [vmem:[%s360 + $0x20] sm:$0xff]
                  %367 = vst [vmem:[%s361 + $0x10] sm:$0xff] %v366
                  %v368 = vld [vmem:[%s360 + $0x30] sm:$0xff]
                  %369 = vst [vmem:[%s361 + $0x18] sm:$0xff] %v368
                $region72: #{tpu_custom_call.1} parent=66 // loop_footer
                  %s359 = sadd.s32 1, %s355
                $region73: #{tpu_custom_call.1} parent=66 // loop_footer_branch
                  %354 = sbr.rel target = $region69
                $region74: #{tpu_custom_call.1} parent=66 // loop_exit
                  _
              $region67: #{tpu_custom_call.1} parent=51 // pred_fallthru
                _
              // Predicated region
              $region75: #{tpu_custom_call.1} parent=51 // pred_check
                _
              $region76: #{tpu_custom_call.1} parent=51 // pred_check_branch
                %371 = sbr.rel target = $region78
              $region77: #{tpu_custom_call.1} parent=51 // pred_region
                _
              $region78: #{tpu_custom_call.1} parent=51 // pred_fallthru
                _
            $region52: #{tpu_custom_call.1} parent=47 // pred_fallthru
              _
            // Predicated region
            $region53: #{tpu_custom_call.1} parent=47 // pred_check
              _
            $region54: #{tpu_custom_call.1} parent=47 // pred_check_branch
              %333 = sbr.rel target = $region56
            $region55: #{tpu_custom_call.1} parent=47 // pred_region
              %s335 = ssub.s32 256, 1
              loop: start=0, step=1, limit=1
              $region57: #{tpu_custom_call.1} parent=55 // loop_pre_header
                _
              $region58: #{tpu_custom_call.1} parent=55 // loop_header
                %s337 = sphi 0, %s341
                %p338 = scmp.ge.s32.totalorder %s337, 1
                %s342 = sphi %s327, %s327
                %s343 = sphi %s325, %s325
              $region59: #{tpu_custom_call.1} parent=55 // loop_header_branch
                %340 = sbr.rel (%p338) target = $region63
              $region60: #{tpu_custom_call.1} parent=55 // loop_body
                %v344 = vld [vmem:[%s342] sm:%s335]
                %345 = vst [vmem:[%s343] sm:%s335] %v344
                %v346 = vld [vmem:[%s342 + $0x10] sm:%s335]
                %347 = vst [vmem:[%s343 + $0x8] sm:%s335] %v346
                %v348 = vld [vmem:[%s342 + $0x20] sm:%s335]
                %349 = vst [vmem:[%s343 + $0x10] sm:%s335] %v348
                %v350 = vld [vmem:[%s342 + $0x30] sm:%s335]
                %351 = vst [vmem:[%s343 + $0x18] sm:%s335] %v350
              $region61: #{tpu_custom_call.1} parent=55 // loop_footer
                %s341 = sadd.s32 1, %s337
              $region62: #{tpu_custom_call.1} parent=55 // loop_footer_branch
                %336 = sbr.rel target = $region58
              $region63: #{tpu_custom_call.1} parent=55 // loop_exit
                _
            $region56: #{tpu_custom_call.1} parent=47 // pred_fallthru
              _
          $region48: #{tpu_custom_call.1} parent=43 // pred_fallthru
            _
          %372 = vnop
        $region44: #{tpu_custom_call.1} parent=39 // pred_fallthru
          _
      $region40: #{tpu_custom_call.1} parent=5 // pred_fallthru
        _
      %p373 = scmp.le.s32.totalorder 1, %s26
      %p374 = scmp.lt.s32.totalorder %s26, 3
      %p375 = pnand %p373, %p374
      %p376 = pneg %p375
      // Predicated region
      $region79: #{tpu_custom_call.1} parent=5 // pred_check
        _
      $region80: #{tpu_custom_call.1} parent=5 // pred_check_branch
        %378 = sbr.rel (%p375) target = $region82
      $region81: #{tpu_custom_call.1} parent=5 // pred_region
        %s379 = ssub.s32 %s26, 1
        %s380 = sand.u32 %s39, 1
        %s381 = sand.u32 %s39, 1
        %s382 = smul.addr %s381, 32
        %s383 = scalar_lea.vmem [#allocation2], %s382
        // Predicated region
        $region83: #{tpu_custom_call.1} parent=81 // pred_check
          %p384 = pneg %p52
        $region84: #{tpu_custom_call.1} parent=81 // pred_check_branch
          %386 = sbr.rel (%p384) target = $region86
        $region85: #{tpu_custom_call.1} parent=81 // pred_region
          _
        $region86: #{tpu_custom_call.1} parent=81 // pred_fallthru
          _
        %s387 = sand.u32 %s39, 1
        %s388 = sand.u32 %s39, 1
        %s389 = smul.addr %s388, 32
        %s390 = scalar_lea.vmem [#allocation2], %s389
        %p391 = pneg %p52
        %p392 = pneg %p49
        %p393 = pneg %p73
        %p394 = pneg %p70
        %p395 = pneg %p94
        %p396 = pneg %p91
        %p397 = pneg %p115
        %p398 = pneg %p112
        %p399 = pneg %p136
        %p400 = pneg %p133
        %p401 = pneg %p157
        %p402 = pneg %p154
        %p403 = pneg %p178
        %p404 = pneg %p175
        %p405 = pneg %p204
        %p406 = pneg %p201
        %s407 = sand.u32 %s191, 1
        %s408 = scalar_lea.sflag [#allocation4], %s407
        %s409 = sand.u32 %s191, 1
        %s410 = smul.addr %s409, 32
        %s411 = scalar_lea.vmem [#allocation3], %s410
        %p412 = pneg %p230
        %p413 = pneg %p227
        %s414 = sand.u32 %s31, 1
        %s415 = scalar_lea.sflag [#allocation6], %s414
        %s416 = sand.u32 %s217, 1
        %s417 = scalar_lea.vmem [#allocation5], %s416
        %p418 = pneg %p256
        %p419 = pneg %p253
        %s420 = sand.u32 %s31, 1
        %s421 = scalar_lea.sflag [#allocation6], %s420
        %s422 = sand.u32 %s243, 1
        %s423 = smul.addr %s422, 8
        %s424 = scalar_lea.vmem [#allocation7], %s423
        %p425 = pneg %p282
        %p426 = pneg %p279
        %s427 = sand.u32 %s269, 1
        %s428 = scalar_lea.sflag [#allocation9], %s427
        %s429 = sand.u32 %s269, 1
        %s430 = scalar_lea.vmem [#allocation8], %s429
        %v431 = vld [vmem:[%s383] sm:$0xff]
        %v432 = vld [vmem:[%s383 + $0x8] sm:$0xff]
        %v433 = vld [vmem:[%s383 + $0x10] sm:$0xff]
        %v434 = vld [vmem:[%s383 + $0x18] sm:$0xff]
        %v435 = vld [vmem:[%s1] sm:$0xff]
        %v436 = vld [vmem:[%s2] sm:$0xff]
        %v437 = vld [vmem:[%s3] sm:$0xff]
        %v438 = vld [vmem:[%s3 + $0x8] sm:$0xff]
        %v439 = vld [vmem:[%s3 + $0x10] sm:$0xff]
        %v440 = vld [vmem:[%s3 + $0x18] sm:$0xff]
        %v441 = vld [vmem:[%s3 + $0x20] sm:$0xff]
        %v442 = vld [vmem:[%s3 + $0x28] sm:$0xff]
        %v443 = vld [vmem:[%s3 + $0x30] sm:$0xff]
        %v444 = vld [vmem:[%s3 + $0x38] sm:$0xff]
        %v445 = vld [vmem:[%s4] sm:$0xff]
        %v446 = vld [vmem:[%s4 + $0x8] sm:$0xff]
        %v447 = vld [vmem:[%s4 + $0x10] sm:$0xff]
        %v448 = vld [vmem:[%s4 + $0x18] sm:$0xff]
        %v449 = vld [vmem:[%s4 + $0x20] sm:$0xff]
        %v450 = vld [vmem:[%s4 + $0x28] sm:$0xff]
        %v451 = vld [vmem:[%s4 + $0x30] sm:$0xff]
        %v452 = vld [vmem:[%s4 + $0x38] sm:$0xff]
        %v453 = vld [vmem:[%s5] sm:$0xff]
        %v454 = vld [vmem:[%s5 + $0x8] sm:$0xff]
        %v455 = vld [vmem:[%s5 + $0x10] sm:$0xff]
        %v456 = vld [vmem:[%s5 + $0x18] sm:$0xff]
        %v457 = vld [vmem:[%s6] sm:$0xff]
        %v458 = vld [vmem:[%s6 + $0x8] sm:$0xff]
        %v459 = vld [vmem:[%s6 + $0x10] sm:$0xff]
        %v460 = vld [vmem:[%s6 + $0x18] sm:$0xff]
        %462 = vset.pattern.permute.xlu0 0
        %463 = vperm.xlu0 %462, %v436
        %v464 = vpop.permute.xlu0 %463
        %vm466 = vcmask 261120
        %v468 = vsel %vm466, %v435, 0
        %470 = vmatpush.msra.mxu0 0.0
        %471 = vmatpush.msra.mxu0 0.0
        %472 = vmatpush.msra.mxu0 0.0
        %473 = vmatpush.msra.mxu0 0.0
        %474 = vmatpush.msra.mxu0 0.0
        %475 = vmatpush.msra.mxu0 0.0
        %476 = vmatpush.msra.mxu0 0.0
        %477 = vmatpush.msra.mxu0 0.0
        %478 = vmatpush.msra.mxu0 0.0
        %479 = vmatpush.msra.mxu0 0.0
        %480 = vmatpush.msra.mxu0 0.0
        %481 = vmatpush.msra.mxu0 0.0
        %v482 = vand.u32 %v434, 4294901760
        %483 = vmatpush.msra.mxu0 %v482
        %v484 = vand.u32 %v433, 4294901760
        %485 = vmatpush.msra.mxu0 %v484
        %v486 = vand.u32 %v432, 4294901760
        %487 = vmatpush.msra.mxu0 %v486
        %v488 = vand.u32 %v431, 4294901760
        %489 = vmatpush.msra.mxu0 %v488
        %v490 = vand.u32 %v468, 4294901760
        %v491 = vsub.f32 %v468, %v490
        %v492 = vand.u32 %v491, 4294901760
        %v493 = vsub.f32 %v491, %v492
        %v494 = vand.u32 %v493, 4294901760
        %495 = vmatmul.f32.gmra.mxu0 %v494
        %v496 = vpop.f32.mrf.mxu0
        %v497 = vadd.f32 %v464, %v496
        %498 = vdwg.mxu0
        %499 = vmatpush.msra.mxu0 0.0
        %500 = vmatpush.msra.mxu0 0.0
        %501 = vmatpush.msra.mxu0 0.0
        %502 = vmatpush.msra.mxu0 0.0
        %503 = vmatpush.msra.mxu0 0.0
        %504 = vmatpush.msra.mxu0 0.0
        %505 = vmatpush.msra.mxu0 0.0
        %506 = vmatpush.msra.mxu0 0.0
        %507 = vmatpush.msra.mxu0 0.0
        %508 = vmatpush.msra.mxu0 0.0
        %509 = vmatpush.msra.mxu0 0.0
        %510 = vmatpush.msra.mxu0 0.0
        %v511 = vand.u32 %v434, 4294901760
        %v512 = vsub.f32 %v434, %v511
        %v513 = vand.u32 %v512, 4294901760
        %v514 = vsub.f32 %v512, %v513
        %v515 = vand.u32 %v514, 4294901760
        %516 = vmatpush.msra.mxu0 %v515
        %v517 = vand.u32 %v433, 4294901760
        %v518 = vsub.f32 %v433, %v517
        %v519 = vand.u32 %v518, 4294901760
        %v520 = vsub.f32 %v518, %v519
        %v521 = vand.u32 %v520, 4294901760
        %522 = vmatpush.msra.mxu0 %v521
        %v523 = vand.u32 %v432, 4294901760
        %v524 = vsub.f32 %v432, %v523
        %v525 = vand.u32 %v524, 4294901760
        %v526 = vsub.f32 %v524, %v525
        %v527 = vand.u32 %v526, 4294901760
        %528 = vmatpush.msra.mxu0 %v527
        %v529 = vand.u32 %v431, 4294901760
        %v530 = vsub.f32 %v431, %v529
        %v531 = vand.u32 %v530, 4294901760
        %v532 = vsub.f32 %v530, %v531
        %v533 = vand.u32 %v532, 4294901760
        %534 = vmatpush.msra.mxu0 %v533
        %v535 = vand.u32 %v468, 4294901760
        %536 = vmatmul.f32.gmra.mxu0 %v535
        %v537 = vpop.f32.mrf.mxu0
        %v538 = vadd.f32 %v497, %v537
        %539 = vdwg.mxu0
        %540 = vmatpush.msra.mxu0 0.0
        %541 = vmatpush.msra.mxu0 0.0
        %542 = vmatpush.msra.mxu0 0.0
        %543 = vmatpush.msra.mxu0 0.0
        %544 = vmatpush.msra.mxu0 0.0
        %545 = vmatpush.msra.mxu0 0.0
        %546 = vmatpush.msra.mxu0 0.0
        %547 = vmatpush.msra.mxu0 0.0
        %548 = vmatpush.msra.mxu0 0.0
        %549 = vmatpush.msra.mxu0 0.0
        %550 = vmatpush.msra.mxu0 0.0
        %551 = vmatpush.msra.mxu0 0.0
        %v552 = vand.u32 %v434, 4294901760
        %v553 = vsub.f32 %v434, %v552
        %554 = vmatpush.msra.mxu0 %v553
        %v555 = vand.u32 %v433, 4294901760
        %v556 = vsub.f32 %v433, %v555
        %557 = vmatpush.msra.mxu0 %v556
        %v558 = vand.u32 %v432, 4294901760
        %v559 = vsub.f32 %v432, %v558
        %560 = vmatpush.msra.mxu0 %v559
        %v561 = vand.u32 %v431, 4294901760
        %v562 = vsub.f32 %v431, %v561
        %563 = vmatpush.msra.mxu0 %v562
        %v564 = vand.u32 %v468, 4294901760
        %v565 = vsub.f32 %v468, %v564
        %566 = vmatmul.f32.gmra.mxu0 %v565
        %v567 = vpop.f32.mrf.mxu0
        %v568 = vadd.f32 %v538, %v567
        %569 = vdwg.mxu0
        %570 = vmatpush.msra.mxu0 0.0
        %571 = vmatpush.msra.mxu0 0.0
        %572 = vmatpush.msra.mxu0 0.0
        %573 = vmatpush.msra.mxu0 0.0
        %574 = vmatpush.msra.mxu0 0.0
        %575 = vmatpush.msra.mxu0 0.0
        %576 = vmatpush.msra.mxu0 0.0
        %577 = vmatpush.msra.mxu0 0.0
        %578 = vmatpush.msra.mxu0 0.0
        %579 = vmatpush.msra.mxu0 0.0
        %580 = vmatpush.msra.mxu0 0.0
        %581 = vmatpush.msra.mxu0 0.0
        %v582 = vand.u32 %v434, 4294901760
        %583 = vmatpush.msra.mxu0 %v582
        %v584 = vand.u32 %v433, 4294901760
        %585 = vmatpush.msra.mxu0 %v584
        %v586 = vand.u32 %v432, 4294901760
        %587 = vmatpush.msra.mxu0 %v586
        %v588 = vand.u32 %v431, 4294901760
        %589 = vmatpush.msra.mxu0 %v588
        %v590 = vand.u32 %v468, 4294901760
        %v591 = vsub.f32 %v468, %v590
        %v592 = vand.u32 %v591, 4294901760
        %593 = vmatmul.f32.gmra.mxu0 %v592
        %v594 = vpop.f32.mrf.mxu0
        %v595 = vadd.f32 %v568, %v594
        %596 = vdwg.mxu0
        %597 = vmatpush.msra.mxu0 0.0
        %598 = vmatpush.msra.mxu0 0.0
        %599 = vmatpush.msra.mxu0 0.0
        %600 = vmatpush.msra.mxu0 0.0
        %601 = vmatpush.msra.mxu0 0.0
        %602 = vmatpush.msra.mxu0 0.0
        %603 = vmatpush.msra.mxu0 0.0
        %604 = vmatpush.msra.mxu0 0.0
        %605 = vmatpush.msra.mxu0 0.0
        %606 = vmatpush.msra.mxu0 0.0
        %607 = vmatpush.msra.mxu0 0.0
        %608 = vmatpush.msra.mxu0 0.0
        %v609 = vand.u32 %v434, 4294901760
        %v610 = vsub.f32 %v434, %v609
        %v611 = vand.u32 %v610, 4294901760
        %612 = vmatpush.msra.mxu0 %v611
        %v613 = vand.u32 %v433, 4294901760
        %v614 = vsub.f32 %v433, %v613
        %v615 = vand.u32 %v614, 4294901760
        %616 = vmatpush.msra.mxu0 %v615
        %v617 = vand.u32 %v432, 4294901760
        %v618 = vsub.f32 %v432, %v617
        %v619 = vand.u32 %v618, 4294901760
        %620 = vmatpush.msra.mxu0 %v619
        %v621 = vand.u32 %v431, 4294901760
        %v622 = vsub.f32 %v431, %v621
        %v623 = vand.u32 %v622, 4294901760
        %624 = vmatpush.msra.mxu0 %v623
        %v625 = vand.u32 %v468, 4294901760
        %626 = vmatmul.f32.gmra.mxu0 %v625
        %v627 = vpop.f32.mrf.mxu0
        %v628 = vadd.f32 %v595, %v627
        %629 = vdwg.mxu0
        %630 = vmatpush.msra.mxu0 0.0
        %631 = vmatpush.msra.mxu0 0.0
        %632 = vmatpush.msra.mxu0 0.0
        %633 = vmatpush.msra.mxu0 0.0
        %634 = vmatpush.msra.mxu0 0.0
        %635 = vmatpush.msra.mxu0 0.0
        %636 = vmatpush.msra.mxu0 0.0
        %637 = vmatpush.msra.mxu0 0.0
        %638 = vmatpush.msra.mxu0 0.0
        %639 = vmatpush.msra.mxu0 0.0
        %640 = vmatpush.msra.mxu0 0.0
        %641 = vmatpush.msra.mxu0 0.0
        %v642 = vand.u32 %v434, 4294901760
        %643 = vmatpush.msra.mxu0 %v642
        %v644 = vand.u32 %v433, 4294901760
        %645 = vmatpush.msra.mxu0 %v644
        %v646 = vand.u32 %v432, 4294901760
        %647 = vmatpush.msra.mxu0 %v646
        %v648 = vand.u32 %v431, 4294901760
        %649 = vmatpush.msra.mxu0 %v648
        %v650 = vand.u32 %v468, 4294901760
        %651 = vmatmul.f32.gmra.mxu0 %v650
        %v652 = vpop.f32.mrf.mxu0
        %v653 = vadd.f32 %v628, %v652
        %654 = vdwg.mxu0
        %655 = vst [vmem:[%s424] sm:$0xff] %v653
        %v656 = vmul.f32 %v653, %v653
        %v657 = vrot.slane %v656, 4
        %v658 = vadd.f32 %v656, %v657
        %v659 = vrot.slane %v658, 2
        %v660 = vadd.f32 %v658, %v659
        %v661 = vrot.slane %v660, 1
        %v662 = vadd.f32 %v660, %v661
        %v663 = vmax.f32 %v662, 1e-24
        %v664 = vrsqrt.pop %v663
        %v665 = vmul.f32 %v664, %v663
        %v666 = vmul.f32 %v665, %v664
        %v667 = vmul.f32 0.5, %v666
        %v668 = vsub.f32 1.5, %v667
        %v669 = vmul.f32 %v664, %v668
        %vm670 = vweird.f32 %v663
        %vm671 = vweird.f32 %v664
        %vm672 = vmor %vm670, %vm671
        %v673 = vsel %vm672, %v664, %v669
        %v674 = vmul.f32 %v653, %v673
        %vm675 = vcmask 64512
        %v677 = vsel %vm675, %v445, 0
        %v680 = vsel %vm675, %v446, 0
        %v683 = vsel %vm675, %v447, 0
        %v686 = vsel %vm675, %v448, 0
        %v689 = vsel %vm675, %v449, 0
        %v692 = vsel %vm675, %v450, 0
        %v695 = vsel %vm675, %v451, 0
        %v698 = vsel %vm675, %v452, 0
        %700 = vmatpush.msra.mxu0 0.0
        %701 = vmatpush.msra.mxu0 0.0
        %702 = vmatpush.msra.mxu0 0.0
        %703 = vmatpush.msra.mxu0 0.0
        %704 = vmatpush.msra.mxu0 0.0
        %705 = vmatpush.msra.mxu0 0.0
        %706 = vmatpush.msra.mxu0 0.0
        %707 = vmatpush.msra.mxu0 0.0
        %708 = vmatpush.msra.mxu0 0.0
        %709 = vmatpush.msra.mxu0 0.0
        %710 = vmatpush.msra.mxu0 0.0
        %711 = vmatpush.msra.mxu0 0.0
        %712 = vmatpush.msra.mxu0 0.0
        %713 = vmatpush.msra.mxu0 0.0
        %714 = vmatpush.msra.mxu0 0.0
        %v715 = vand.u32 %v674, 4294901760
        %716 = vmatpush.msra.mxu0 %v715
        %v717 = vand.u32 %v677, 4294901760
        %v718 = vsub.f32 %v677, %v717
        %v719 = vand.u32 %v718, 4294901760
        %v720 = vsub.f32 %v718, %v719
        %v721 = vand.u32 %v720, 4294901760
        %722 = vmatmul.f32.gmra.mxu0 %v721
        %v723 = vpop.f32.mrf.mxu0
        %v724 = vadd.f32 0.0, %v723
        %v725 = vand.u32 %v680, 4294901760
        %v726 = vsub.f32 %v680, %v725
        %v727 = vand.u32 %v726, 4294901760
        %v728 = vsub.f32 %v726, %v727
        %v729 = vand.u32 %v728, 4294901760
        %730 = vmatmul.f32.gmra.mxu0 %v729
        %v731 = vpop.f32.mrf.mxu0
        %v732 = vadd.f32 0.0, %v731
        %v733 = vand.u32 %v683, 4294901760
        %v734 = vsub.f32 %v683, %v733
        %v735 = vand.u32 %v734, 4294901760
        %v736 = vsub.f32 %v734, %v735
        %v737 = vand.u32 %v736, 4294901760
        %738 = vmatmul.f32.gmra.mxu0 %v737
        %v739 = vpop.f32.mrf.mxu0
        %v740 = vadd.f32 0.0, %v739
        %v741 = vand.u32 %v686, 4294901760
        %v742 = vsub.f32 %v686, %v741
        %v743 = vand.u32 %v742, 4294901760
        %v744 = vsub.f32 %v742, %v743
        %v745 = vand.u32 %v744, 4294901760
        %746 = vmatmul.f32.gmra.mxu0 %v745
        %v747 = vpop.f32.mrf.mxu0
        %v748 = vadd.f32 0.0, %v747
        %v749 = vand.u32 %v689, 4294901760
        %v750 = vsub.f32 %v689, %v749
        %v751 = vand.u32 %v750, 4294901760
        %v752 = vsub.f32 %v750, %v751
        %v753 = vand.u32 %v752, 4294901760
        %754 = vmatmul.f32.gmra.mxu0 %v753
        %v755 = vpop.f32.mrf.mxu0
        %v756 = vadd.f32 0.0, %v755
        %v757 = vand.u32 %v692, 4294901760
        %v758 = vsub.f32 %v692, %v757
        %v759 = vand.u32 %v758, 4294901760
        %v760 = vsub.f32 %v758, %v759
        %v761 = vand.u32 %v760, 4294901760
        %762 = vmatmul.f32.gmra.mxu0 %v761
        %v763 = vpop.f32.mrf.mxu0
        %v764 = vadd.f32 0.0, %v763
        %v765 = vand.u32 %v695, 4294901760
        %v766 = vsub.f32 %v695, %v765
        %v767 = vand.u32 %v766, 4294901760
        %v768 = vsub.f32 %v766, %v767
        %v769 = vand.u32 %v768, 4294901760
        %770 = vmatmul.f32.gmra.mxu0 %v769
        %v771 = vpop.f32.mrf.mxu0
        %v772 = vadd.f32 0.0, %v771
        %v773 = vand.u32 %v698, 4294901760
        %v774 = vsub.f32 %v698, %v773
        %v775 = vand.u32 %v774, 4294901760
        %v776 = vsub.f32 %v774, %v775
        %v777 = vand.u32 %v776, 4294901760
        %778 = vmatmul.f32.gmra.mxu0 %v777
        %v779 = vpop.f32.mrf.mxu0
        %v780 = vadd.f32 0.0, %v779
        %781 = vdwg.mxu0
        %782 = vmatpush.msra.mxu0 0.0
        %783 = vmatpush.msra.mxu0 0.0
        %784 = vmatpush.msra.mxu0 0.0
        %785 = vmatpush.msra.mxu0 0.0
        %786 = vmatpush.msra.mxu0 0.0
        %787 = vmatpush.msra.mxu0 0.0
        %788 = vmatpush.msra.mxu0 0.0
        %789 = vmatpush.msra.mxu0 0.0
        %790 = vmatpush.msra.mxu0 0.0
        %791 = vmatpush.msra.mxu0 0.0
        %792 = vmatpush.msra.mxu0 0.0
        %793 = vmatpush.msra.mxu0 0.0
        %794 = vmatpush.msra.mxu0 0.0
        %795 = vmatpush.msra.mxu0 0.0
        %796 = vmatpush.msra.mxu0 0.0
        %v797 = vand.u32 %v674, 4294901760
        %v798 = vsub.f32 %v674, %v797
        %v799 = vand.u32 %v798, 4294901760
        %v800 = vsub.f32 %v798, %v799
        %v801 = vand.u32 %v800, 4294901760
        %802 = vmatpush.msra.mxu0 %v801
        %v803 = vand.u32 %v677, 4294901760
        %804 = vmatmul.f32.gmra.mxu0 %v803
        %v805 = vpop.f32.mrf.mxu0
        %v806 = vadd.f32 %v724, %v805
        %v807 = vand.u32 %v680, 4294901760
        %808 = vmatmul.f32.gmra.mxu0 %v807
        %v809 = vpop.f32.mrf.mxu0
        %v810 = vadd.f32 %v732, %v809
        %v811 = vand.u32 %v683, 4294901760
        %812 = vmatmul.f32.gmra.mxu0 %v811
        %v813 = vpop.f32.mrf.mxu0
        %v814 = vadd.f32 %v740, %v813
        %v815 = vand.u32 %v686, 4294901760
        %816 = vmatmul.f32.gmra.mxu0 %v815
        %v817 = vpop.f32.mrf.mxu0
        %v818 = vadd.f32 %v748, %v817
        %v819 = vand.u32 %v689, 4294901760
        %820 = vmatmul.f32.gmra.mxu0 %v819
        %v821 = vpop.f32.mrf.mxu0
        %v822 = vadd.f32 %v756, %v821
        %v823 = vand.u32 %v692, 4294901760
        %824 = vmatmul.f32.gmra.mxu0 %v823
        %v825 = vpop.f32.mrf.mxu0
        %v826 = vadd.f32 %v764, %v825
        %v827 = vand.u32 %v695, 4294901760
        %828 = vmatmul.f32.gmra.mxu0 %v827
        %v829 = vpop.f32.mrf.mxu0
        %v830 = vadd.f32 %v772, %v829
        %v831 = vand.u32 %v698, 4294901760
        %832 = vmatmul.f32.gmra.mxu0 %v831
        %v833 = vpop.f32.mrf.mxu0
        %v834 = vadd.f32 %v780, %v833
        %835 = vdwg.mxu0
        %836 = vmatpush.msra.mxu0 0.0
        %837 = vmatpush.msra.mxu0 0.0
        %838 = vmatpush.msra.mxu0 0.0
        %839 = vmatpush.msra.mxu0 0.0
        %840 = vmatpush.msra.mxu0 0.0
        %841 = vmatpush.msra.mxu0 0.0
        %842 = vmatpush.msra.mxu0 0.0
        %843 = vmatpush.msra.mxu0 0.0
        %844 = vmatpush.msra.mxu0 0.0
        %845 = vmatpush.msra.mxu0 0.0
        %846 = vmatpush.msra.mxu0 0.0
        %847 = vmatpush.msra.mxu0 0.0
        %848 = vmatpush.msra.mxu0 0.0
        %849 = vmatpush.msra.mxu0 0.0
        %850 = vmatpush.msra.mxu0 0.0
        %v851 = vand.u32 %v674, 4294901760
        %v852 = vsub.f32 %v674, %v851
        %853 = vmatpush.msra.mxu0 %v852
        %v854 = vand.u32 %v677, 4294901760
        %v855 = vsub.f32 %v677, %v854
        %856 = vmatmul.f32.gmra.mxu0 %v855
        %v857 = vpop.f32.mrf.mxu0
        %v858 = vadd.f32 %v806, %v857
        %v859 = vand.u32 %v680, 4294901760
        %v860 = vsub.f32 %v680, %v859
        %861 = vmatmul.f32.gmra.mxu0 %v860
        %v862 = vpop.f32.mrf.mxu0
        %v863 = vadd.f32 %v810, %v862
        %v864 = vand.u32 %v683, 4294901760
        %v865 = vsub.f32 %v683, %v864
        %866 = vmatmul.f32.gmra.mxu0 %v865
        %v867 = vpop.f32.mrf.mxu0
        %v868 = vadd.f32 %v814, %v867
        %v869 = vand.u32 %v686, 4294901760
        %v870 = vsub.f32 %v686, %v869
        %871 = vmatmul.f32.gmra.mxu0 %v870
        %v872 = vpop.f32.mrf.mxu0
        %v873 = vadd.f32 %v818, %v872
        %v874 = vand.u32 %v689, 4294901760
        %v875 = vsub.f32 %v689, %v874
        %876 = vmatmul.f32.gmra.mxu0 %v875
        %v877 = vpop.f32.mrf.mxu0
        %v878 = vadd.f32 %v822, %v877
        %v879 = vand.u32 %v692, 4294901760
        %v880 = vsub.f32 %v692, %v879
        %881 = vmatmul.f32.gmra.mxu0 %v880
        %v882 = vpop.f32.mrf.mxu0
        %v883 = vadd.f32 %v826, %v882
        %v884 = vand.u32 %v695, 4294901760
        %v885 = vsub.f32 %v695, %v884
        %886 = vmatmul.f32.gmra.mxu0 %v885
        %v887 = vpop.f32.mrf.mxu0
        %v888 = vadd.f32 %v830, %v887
        %v889 = vand.u32 %v698, 4294901760
        %v890 = vsub.f32 %v698, %v889
        %891 = vmatmul.f32.gmra.mxu0 %v890
        %v892 = vpop.f32.mrf.mxu0
        %v893 = vadd.f32 %v834, %v892
        %894 = vdwg.mxu0
        %895 = vmatpush.msra.mxu0 0.0
        %896 = vmatpush.msra.mxu0 0.0
        %897 = vmatpush.msra.mxu0 0.0
        %898 = vmatpush.msra.mxu0 0.0
        %899 = vmatpush.msra.mxu0 0.0
        %900 = vmatpush.msra.mxu0 0.0
        %901 = vmatpush.msra.mxu0 0.0
        %902 = vmatpush.msra.mxu0 0.0
        %903 = vmatpush.msra.mxu0 0.0
        %904 = vmatpush.msra.mxu0 0.0
        %905 = vmatpush.msra.mxu0 0.0
        %906 = vmatpush.msra.mxu0 0.0
        %907 = vmatpush.msra.mxu0 0.0
        %908 = vmatpush.msra.mxu0 0.0
        %909 = vmatpush.msra.mxu0 0.0
        %v910 = vand.u32 %v674, 4294901760
        %911 = vmatpush.msra.mxu0 %v910
        %v912 = vand.u32 %v677, 4294901760
        %v913 = vsub.f32 %v677, %v912
        %v914 = vand.u32 %v913, 4294901760
        %915 = vmatmul.f32.gmra.mxu0 %v914
        %v916 = vpop.f32.mrf.mxu0
        %v917 = vadd.f32 %v858, %v916
        %v918 = vand.u32 %v680, 4294901760
        %v919 = vsub.f32 %v680, %v918
        %v920 = vand.u32 %v919, 4294901760
        %921 = vmatmul.f32.gmra.mxu0 %v920
        %v922 = vpop.f32.mrf.mxu0
        %v923 = vadd.f32 %v863, %v922
        %v924 = vand.u32 %v683, 4294901760
        %v925 = vsub.f32 %v683, %v924
        %v926 = vand.u32 %v925, 4294901760
        %927 = vmatmul.f32.gmra.mxu0 %v926
        %v928 = vpop.f32.mrf.mxu0
        %v929 = vadd.f32 %v868, %v928
        %v930 = vand.u32 %v686, 4294901760
        %v931 = vsub.f32 %v686, %v930
        %v932 = vand.u32 %v931, 4294901760
        %933 = vmatmul.f32.gmra.mxu0 %v932
        %v934 = vpop.f32.mrf.mxu0
        %v935 = vadd.f32 %v873, %v934
        %v936 = vand.u32 %v689, 4294901760
        %v937 = vsub.f32 %v689, %v936
        %v938 = vand.u32 %v937, 4294901760
        %939 = vmatmul.f32.gmra.mxu0 %v938
        %v940 = vpop.f32.mrf.mxu0
        %v941 = vadd.f32 %v878, %v940
        %v942 = vand.u32 %v692, 4294901760
        %v943 = vsub.f32 %v692, %v942
        %v944 = vand.u32 %v943, 4294901760
        %945 = vmatmul.f32.gmra.mxu0 %v944
        %v946 = vpop.f32.mrf.mxu0
        %v947 = vadd.f32 %v883, %v946
        %v948 = vand.u32 %v695, 4294901760
        %v949 = vsub.f32 %v695, %v948
        %v950 = vand.u32 %v949, 4294901760
        %951 = vmatmul.f32.gmra.mxu0 %v950
        %v952 = vpop.f32.mrf.mxu0
        %v953 = vadd.f32 %v888, %v952
        %v954 = vand.u32 %v698, 4294901760
        %v955 = vsub.f32 %v698, %v954
        %v956 = vand.u32 %v955, 4294901760
        %957 = vmatmul.f32.gmra.mxu0 %v956
        %v958 = vpop.f32.mrf.mxu0
        %v959 = vadd.f32 %v893, %v958
        %960 = vdwg.mxu0
        %961 = vmatpush.msra.mxu0 0.0
        %962 = vmatpush.msra.mxu0 0.0
        %963 = vmatpush.msra.mxu0 0.0
        %964 = vmatpush.msra.mxu0 0.0
        %965 = vmatpush.msra.mxu0 0.0
        %966 = vmatpush.msra.mxu0 0.0
        %967 = vmatpush.msra.mxu0 0.0
        %968 = vmatpush.msra.mxu0 0.0
        %969 = vmatpush.msra.mxu0 0.0
        %970 = vmatpush.msra.mxu0 0.0
        %971 = vmatpush.msra.mxu0 0.0
        %972 = vmatpush.msra.mxu0 0.0
        %973 = vmatpush.msra.mxu0 0.0
        %974 = vmatpush.msra.mxu0 0.0
        %975 = vmatpush.msra.mxu0 0.0
        %v976 = vand.u32 %v674, 4294901760
        %v977 = vsub.f32 %v674, %v976
        %v978 = vand.u32 %v977, 4294901760
        %979 = vmatpush.msra.mxu0 %v978
        %v980 = vand.u32 %v677, 4294901760
        %981 = vmatmul.f32.gmra.mxu0 %v980
        %v982 = vpop.f32.mrf.mxu0
        %v983 = vadd.f32 %v917, %v982
        %v984 = vand.u32 %v680, 4294901760
        %985 = vmatmul.f32.gmra.mxu0 %v984
        %v986 = vpop.f32.mrf.mxu0
        %v987 = vadd.f32 %v923, %v986
        %v988 = vand.u32 %v683, 4294901760
        %989 = vmatmul.f32.gmra.mxu0 %v988
        %v990 = vpop.f32.mrf.mxu0
        %v991 = vadd.f32 %v929, %v990
        %v992 = vand.u32 %v686, 4294901760
        %993 = vmatmul.f32.gmra.mxu0 %v992
        %v994 = vpop.f32.mrf.mxu0
        %v995 = vadd.f32 %v935, %v994
        %v996 = vand.u32 %v689, 4294901760
        %997 = vmatmul.f32.gmra.mxu0 %v996
        %v998 = vpop.f32.mrf.mxu0
        %v999 = vadd.f32 %v941, %v998
        %v1000 = vand.u32 %v692, 4294901760
        %1001 = vmatmul.f32.gmra.mxu0 %v1000
        %v1002 = vpop.f32.mrf.mxu0
        %v1003 = vadd.f32 %v947, %v1002
        %v1004 = vand.u32 %v695, 4294901760
        %1005 = vmatmul.f32.gmra.mxu0 %v1004
        %v1006 = vpop.f32.mrf.mxu0
        %v1007 = vadd.f32 %v953, %v1006
        %v1008 = vand.u32 %v698, 4294901760
        %1009 = vmatmul.f32.gmra.mxu0 %v1008
        %v1010 = vpop.f32.mrf.mxu0
        %v1011 = vadd.f32 %v959, %v1010
        %1012 = vdwg.mxu0
        %1013 = vmatpush.msra.mxu0 0.0
        %1014 = vmatpush.msra.mxu0 0.0
        %1015 = vmatpush.msra.mxu0 0.0
        %1016 = vmatpush.msra.mxu0 0.0
        %1017 = vmatpush.msra.mxu0 0.0
        %1018 = vmatpush.msra.mxu0 0.0
        %1019 = vmatpush.msra.mxu0 0.0
        %1020 = vmatpush.msra.mxu0 0.0
        %1021 = vmatpush.msra.mxu0 0.0
        %1022 = vmatpush.msra.mxu0 0.0
        %1023 = vmatpush.msra.mxu0 0.0
        %1024 = vmatpush.msra.mxu0 0.0
        %1025 = vmatpush.msra.mxu0 0.0
        %1026 = vmatpush.msra.mxu0 0.0
        %1027 = vmatpush.msra.mxu0 0.0
        %v1028 = vand.u32 %v674, 4294901760
        %1029 = vmatpush.msra.mxu0 %v1028
        %v1030 = vand.u32 %v677, 4294901760
        %1031 = vmatmul.f32.gmra.mxu0 %v1030
        %v1032 = vpop.f32.mrf.mxu0
        %v1033 = vadd.f32 %v983, %v1032
        %v1034 = vand.u32 %v680, 4294901760
        %1035 = vmatmul.f32.gmra.mxu0 %v1034
        %v1036 = vpop.f32.mrf.mxu0
        %v1037 = vadd.f32 %v987, %v1036
        %v1038 = vand.u32 %v683, 4294901760
        %1039 = vmatmul.f32.gmra.mxu0 %v1038
        %v1040 = vpop.f32.mrf.mxu0
        %v1041 = vadd.f32 %v991, %v1040
        %v1042 = vand.u32 %v686, 4294901760
        %1043 = vmatmul.f32.gmra.mxu0 %v1042
        %v1044 = vpop.f32.mrf.mxu0
        %v1045 = vadd.f32 %v995, %v1044
        %v1046 = vand.u32 %v689, 4294901760
        %1047 = vmatmul.f32.gmra.mxu0 %v1046
        %v1048 = vpop.f32.mrf.mxu0
        %v1049 = vadd.f32 %v999, %v1048
        %v1050 = vand.u32 %v692, 4294901760
        %1051 = vmatmul.f32.gmra.mxu0 %v1050
        %v1052 = vpop.f32.mrf.mxu0
        %v1053 = vadd.f32 %v1003, %v1052
        %v1054 = vand.u32 %v695, 4294901760
        %1055 = vmatmul.f32.gmra.mxu0 %v1054
        %v1056 = vpop.f32.mrf.mxu0
        %v1057 = vadd.f32 %v1007, %v1056
        %v1058 = vand.u32 %v698, 4294901760
        %1059 = vmatmul.f32.gmra.mxu0 %v1058
        %v1060 = vpop.f32.mrf.mxu0
        %v1061 = vadd.f32 %v1011, %v1060
        %1062 = vdwg.mxu0
        %v1063 = vmax.f32 %v1033, %v1049
        %v1064 = vmax.f32 %v1037, %v1053
        %v1065 = vmax.f32 %v1041, %v1057
        %v1066 = vmax.f32 %v1045, %v1061
        %v1067 = vmax.f32 %v1063, %v1064
        %v1068 = vmax.f32 %v1065, %v1066
        %v1069 = vmax.f32 %v1067, %v1068
        %v1070 = vrot.slane %v1069, 4
        %v1071 = vmax.f32 %v1069, %v1070
        %v1072 = vrot.slane %v1071, 2
        %v1073 = vmax.f32 %v1071, %v1072
        %v1074 = vrot.slane %v1073, 1
        %v1075 = vmax.f32 %v1073, %v1074
        %v1076 = vlaneseq
        %v1077 = vshrl.u32 %v1076, 7
        %v1078 = vadd.s32 %v1077, 8
        %v1079 = vadd.s32 %v1077, 16
        %v1080 = vadd.s32 %v1077, 24
        %v1081 = vadd.s32 %v1077, 32
        %v1082 = vadd.s32 %v1077, 40
        %v1083 = vadd.s32 %v1077, 48
        %v1084 = vadd.s32 %v1077, 56
        %vm1085 = vcmp.ge.f32.partialorder %v1033, %v1075
        %vm1086 = vcmp.ge.f32.partialorder %v1037, %v1075
        %vm1087 = vcmp.ge.f32.partialorder %v1041, %v1075
        %vm1088 = vcmp.ge.f32.partialorder %v1045, %v1075
        %vm1089 = vcmp.ge.f32.partialorder %v1049, %v1075
        %vm1090 = vcmp.ge.f32.partialorder %v1053, %v1075
        %vm1091 = vcmp.ge.f32.partialorder %v1057, %v1075
        %vm1092 = vcmp.ge.f32.partialorder %v1061, %v1075
        %v1093 = vsel %vm1085, %v1077, 64
        %v1094 = vsel %vm1086, %v1078, 64
        %v1095 = vsel %vm1087, %v1079, 64
        %v1096 = vsel %vm1088, %v1080, 64
        %v1097 = vsel %vm1089, %v1081, 64
        %v1098 = vsel %vm1090, %v1082, 64
        %v1099 = vsel %vm1091, %v1083, 64
        %v1100 = vsel %vm1092, %v1084, 64
        %vm1101 = vcmp.lt.s32.totalorder %v1093, %v1097
        %v1102 = vsel %vm1101, %v1093, %v1097
        %vm1103 = vcmp.lt.s32.totalorder %v1094, %v1098
        %v1104 = vsel %vm1103, %v1094, %v1098
        %vm1105 = vcmp.lt.s32.totalorder %v1095, %v1099
        %v1106 = vsel %vm1105, %v1095, %v1099
        %vm1107 = vcmp.lt.s32.totalorder %v1096, %v1100
        %v1108 = vsel %vm1107, %v1096, %v1100
        %vm1109 = vcmp.lt.s32.totalorder %v1102, %v1104
        %v1110 = vsel %vm1109, %v1102, %v1104
        %vm1111 = vcmp.lt.s32.totalorder %v1106, %v1108
        %v1112 = vsel %vm1111, %v1106, %v1108
        %vm1113 = vcmp.lt.s32.totalorder %v1110, %v1112
        %v1114 = vsel %vm1113, %v1110, %v1112
        %v1115 = vrot.slane %v1114, 4
        %vm1116 = vcmp.lt.s32.totalorder %v1114, %v1115
        %v1117 = vsel %vm1116, %v1114, %v1115
        %v1118 = vrot.slane %v1117, 2
        %vm1119 = vcmp.lt.s32.totalorder %v1117, %v1118
        %v1120 = vsel %vm1119, %v1117, %v1118
        %v1121 = vrot.slane %v1120, 1
        %vm1122 = vcmp.lt.s32.totalorder %v1120, %v1121
        %v1123 = vsel %vm1122, %v1120, %v1121
        %1124 = vst [vmem:[%s417] sm:$0x1] %v1123
        %vm1125 = vcmp.eq.s32.totalorder %v1077, %v1123
        %vm1126 = vcmp.eq.s32.totalorder %v1078, %v1123
        %vm1127 = vcmp.eq.s32.totalorder %v1079, %v1123
        %vm1128 = vcmp.eq.s32.totalorder %v1080, %v1123
        %vm1129 = vcmp.eq.s32.totalorder %v1081, %v1123
        %vm1130 = vcmp.eq.s32.totalorder %v1082, %v1123
        %vm1131 = vcmp.eq.s32.totalorder %v1083, %v1123
        %vm1132 = vcmp.eq.s32.totalorder %v1084, %v1123
        %v1133 = vsel %vm1125, 1, 0
        %v1134 = vsel %vm1126, 1, 0
        %v1135 = vsel %vm1127, 1, 0
        %v1136 = vsel %vm1128, 1, 0
        %v1137 = vsel %vm1129, 1, 0
        %v1138 = vsel %vm1130, 1, 0
        %v1139 = vsel %vm1131, 1, 0
        %v1140 = vsel %vm1132, 1, 0
        %v1141 = vcvt.s32.f32 %v1133
        %v1142 = vcvt.s32.f32 %v1134
        %v1143 = vcvt.s32.f32 %v1135
        %v1144 = vcvt.s32.f32 %v1136
        %v1145 = vcvt.s32.f32 %v1137
        %v1146 = vcvt.s32.f32 %v1138
        %v1147 = vcvt.s32.f32 %v1139
        %v1148 = vcvt.s32.f32 %v1140
        %1149 = vxpose.xlu0.b32.start [1/16] %v437, 128
        %1150 = vxpose.xlu0.b32.cont [2/16] %v438, 128
        %1151 = vxpose.xlu0.b32.cont [3/16] %v439, 128
        %1152 = vxpose.xlu0.b32.cont [4/16] %v440, 128
        %1153 = vxpose.xlu0.b32.cont [5/16] %v441, 128
        %1154 = vxpose.xlu0.b32.cont [6/16] %v442, 128
        %1155 = vxpose.xlu0.b32.cont [7/16] %v443, 128
        %1156 = vxpose.xlu0.b32.cont [8/16] %v444, 128
        %1157 = vxpose.xlu0.b32.cont [9/16] 0.0, 128
        %1158 = vxpose.xlu0.b32.cont [10/16] 0.0, 128
        %1159 = vxpose.xlu0.b32.cont [11/16] 0.0, 128
        %1160 = vxpose.xlu0.b32.cont [12/16] 0.0, 128
        %1161 = vxpose.xlu0.b32.cont [13/16] 0.0, 128
        %1162 = vxpose.xlu0.b32.cont [14/16] 0.0, 128
        %1163 = vxpose.xlu0.b32.cont [15/16] 0.0, 128
        %1164 = vxpose.xlu0.b32.end [16/16] 0.0, 128
        %v1165 = vpop.trf.xlu0
        %v1166 = vpop.trf.xlu0
        %v1167 = vpop.trf.xlu0
        %v1168 = vpop.trf.xlu0
        %v1169 = vpop.trf.xlu0
        %v1170 = vpop.trf.xlu0
        %v1171 = vpop.trf.xlu0
        %v1172 = vpop.trf.xlu0
        %v1173 = vpop.trf.xlu0
        %v1174 = vpop.trf.xlu0
        %v1175 = vpop.trf.xlu0
        %v1176 = vpop.trf.xlu0
        %v1177 = vpop.trf.xlu0
        %v1178 = vpop.trf.xlu0
        %v1179 = vpop.trf.xlu0
        %v1180 = vpop.trf.xlu0
        %vm1181 = vcmask 523264
        %v1183 = vsel %vm1181, %v1165, 0
        %1185 = vmatpush.msra.mxu0 0.0
        %1186 = vmatpush.msra.mxu0 0.0
        %1187 = vmatpush.msra.mxu0 0.0
        %1188 = vmatpush.msra.mxu0 0.0
        %1189 = vmatpush.msra.mxu0 0.0
        %1190 = vmatpush.msra.mxu0 0.0
        %1191 = vmatpush.msra.mxu0 0.0
        %1192 = vmatpush.msra.mxu0 0.0
        %v1193 = vand.u32 %v1148, 4294901760
        %1194 = vmatpush.msra.mxu0 %v1193
        %v1195 = vand.u32 %v1147, 4294901760
        %1196 = vmatpush.msra.mxu0 %v1195
        %v1197 = vand.u32 %v1146, 4294901760
        %1198 = vmatpush.msra.mxu0 %v1197
        %v1199 = vand.u32 %v1145, 4294901760
        %1200 = vmatpush.msra.mxu0 %v1199
        %v1201 = vand.u32 %v1144, 4294901760
        %1202 = vmatpush.msra.mxu0 %v1201
        %v1203 = vand.u32 %v1143, 4294901760
        %1204 = vmatpush.msra.mxu0 %v1203
        %v1205 = vand.u32 %v1142, 4294901760
        %1206 = vmatpush.msra.mxu0 %v1205
        %v1207 = vand.u32 %v1141, 4294901760
        %1208 = vmatpush.msra.mxu0 %v1207
        %v1209 = vand.u32 %v1183, 4294901760
        %v1210 = vsub.f32 %v1183, %v1209
        %v1211 = vand.u32 %v1210, 4294901760
        %v1212 = vsub.f32 %v1210, %v1211
        %v1213 = vand.u32 %v1212, 4294901760
        %1214 = vmatmul.f32.gmra.mxu0 %v1213
        %v1215 = vpop.f32.mrf.mxu0
        %v1216 = vadd.f32 0.0, %v1215
        %1217 = vdwg.mxu0
        %1218 = vmatpush.msra.mxu0 0.0
        %1219 = vmatpush.msra.mxu0 0.0
        %1220 = vmatpush.msra.mxu0 0.0
        %1221 = vmatpush.msra.mxu0 0.0
        %1222 = vmatpush.msra.mxu0 0.0
        %1223 = vmatpush.msra.mxu0 0.0
        %1224 = vmatpush.msra.mxu0 0.0
        %1225 = vmatpush.msra.mxu0 0.0
        %v1226 = vand.u32 %v1148, 4294901760
        %v1227 = vsub.f32 %v1148, %v1226
        %v1228 = vand.u32 %v1227, 4294901760
        %v1229 = vsub.f32 %v1227, %v1228
        %v1230 = vand.u32 %v1229, 4294901760
        %1231 = vmatpush.msra.mxu0 %v1230
        %v1232 = vand.u32 %v1147, 4294901760
        %v1233 = vsub.f32 %v1147, %v1232
        %v1234 = vand.u32 %v1233, 4294901760
        %v1235 = vsub.f32 %v1233, %v1234
        %v1236 = vand.u32 %v1235, 4294901760
        %1237 = vmatpush.msra.mxu0 %v1236
        %v1238 = vand.u32 %v1146, 4294901760
        %v1239 = vsub.f32 %v1146, %v1238
        %v1240 = vand.u32 %v1239, 4294901760
        %v1241 = vsub.f32 %v1239, %v1240
        %v1242 = vand.u32 %v1241, 4294901760
        %1243 = vmatpush.msra.mxu0 %v1242
        %v1244 = vand.u32 %v1145, 4294901760
        %v1245 = vsub.f32 %v1145, %v1244
        %v1246 = vand.u32 %v1245, 4294901760
        %v1247 = vsub.f32 %v1245, %v1246
        %v1248 = vand.u32 %v1247, 4294901760
        %1249 = vmatpush.msra.mxu0 %v1248
        %v1250 = vand.u32 %v1144, 4294901760
        %v1251 = vsub.f32 %v1144, %v1250
        %v1252 = vand.u32 %v1251, 4294901760
        %v1253 = vsub.f32 %v1251, %v1252
        %v1254 = vand.u32 %v1253, 4294901760
        %1255 = vmatpush.msra.mxu0 %v1254
        %v1256 = vand.u32 %v1143, 4294901760
        %v1257 = vsub.f32 %v1143, %v1256
        %v1258 = vand.u32 %v1257, 4294901760
        %v1259 = vsub.f32 %v1257, %v1258
        %v1260 = vand.u32 %v1259, 4294901760
        %1261 = vmatpush.msra.mxu0 %v1260
        %v1262 = vand.u32 %v1142, 4294901760
        %v1263 = vsub.f32 %v1142, %v1262
        %v1264 = vand.u32 %v1263, 4294901760
        %v1265 = vsub.f32 %v1263, %v1264
        %v1266 = vand.u32 %v1265, 4294901760
        %1267 = vmatpush.msra.mxu0 %v1266
        %v1268 = vand.u32 %v1141, 4294901760
        %v1269 = vsub.f32 %v1141, %v1268
        %v1270 = vand.u32 %v1269, 4294901760
        %v1271 = vsub.f32 %v1269, %v1270
        %v1272 = vand.u32 %v1271, 4294901760
        %1273 = vmatpush.msra.mxu0 %v1272
        %v1274 = vand.u32 %v1183, 4294901760
        %1275 = vmatmul.f32.gmra.mxu0 %v1274
        %v1276 = vpop.f32.mrf.mxu0
        %v1277 = vadd.f32 %v1216, %v1276
        %1278 = vdwg.mxu0
        %1279 = vmatpush.msra.mxu0 0.0
        %1280 = vmatpush.msra.mxu0 0.0
        %1281 = vmatpush.msra.mxu0 0.0
        %1282 = vmatpush.msra.mxu0 0.0
        %1283 = vmatpush.msra.mxu0 0.0
        %1284 = vmatpush.msra.mxu0 0.0
        %1285 = vmatpush.msra.mxu0 0.0
        %1286 = vmatpush.msra.mxu0 0.0
        %v1287 = vand.u32 %v1148, 4294901760
        %v1288 = vsub.f32 %v1148, %v1287
        %1289 = vmatpush.msra.mxu0 %v1288
        %v1290 = vand.u32 %v1147, 4294901760
        %v1291 = vsub.f32 %v1147, %v1290
        %1292 = vmatpush.msra.mxu0 %v1291
        %v1293 = vand.u32 %v1146, 4294901760
        %v1294 = vsub.f32 %v1146, %v1293
        %1295 = vmatpush.msra.mxu0 %v1294
        %v1296 = vand.u32 %v1145, 4294901760
        %v1297 = vsub.f32 %v1145, %v1296
        %1298 = vmatpush.msra.mxu0 %v1297
        %v1299 = vand.u32 %v1144, 4294901760
        %v1300 = vsub.f32 %v1144, %v1299
        %1301 = vmatpush.msra.mxu0 %v1300
        %v1302 = vand.u32 %v1143, 4294901760
        %v1303 = vsub.f32 %v1143, %v1302
        %1304 = vmatpush.msra.mxu0 %v1303
        %v1305 = vand.u32 %v1142, 4294901760
        %v1306 = vsub.f32 %v1142, %v1305
        %1307 = vmatpush.msra.mxu0 %v1306
        %v1308 = vand.u32 %v1141, 4294901760
        %v1309 = vsub.f32 %v1141, %v1308
        %1310 = vmatpush.msra.mxu0 %v1309
        %v1311 = vand.u32 %v1183, 4294901760
        %v1312 = vsub.f32 %v1183, %v1311
        %1313 = vmatmul.f32.gmra.mxu0 %v1312
        %v1314 = vpop.f32.mrf.mxu0
        %v1315 = vadd.f32 %v1277, %v1314
        %1316 = vdwg.mxu0
        %1317 = vmatpush.msra.mxu0 0.0
        %1318 = vmatpush.msra.mxu0 0.0
        %1319 = vmatpush.msra.mxu0 0.0
        %1320 = vmatpush.msra.mxu0 0.0
        %1321 = vmatpush.msra.mxu0 0.0
        %1322 = vmatpush.msra.mxu0 0.0
        %1323 = vmatpush.msra.mxu0 0.0
        %1324 = vmatpush.msra.mxu0 0.0
        %v1325 = vand.u32 %v1148, 4294901760
        %1326 = vmatpush.msra.mxu0 %v1325
        %v1327 = vand.u32 %v1147, 4294901760
        %1328 = vmatpush.msra.mxu0 %v1327
        %v1329 = vand.u32 %v1146, 4294901760
        %1330 = vmatpush.msra.mxu0 %v1329
        %v1331 = vand.u32 %v1145, 4294901760
        %1332 = vmatpush.msra.mxu0 %v1331
        %v1333 = vand.u32 %v1144, 4294901760
        %1334 = vmatpush.msra.mxu0 %v1333
        %v1335 = vand.u32 %v1143, 4294901760
        %1336 = vmatpush.msra.mxu0 %v1335
        %v1337 = vand.u32 %v1142, 4294901760
        %1338 = vmatpush.msra.mxu0 %v1337
        %v1339 = vand.u32 %v1141, 4294901760
        %1340 = vmatpush.msra.mxu0 %v1339
        %v1341 = vand.u32 %v1183, 4294901760
        %v1342 = vsub.f32 %v1183, %v1341
        %v1343 = vand.u32 %v1342, 4294901760
        %1344 = vmatmul.f32.gmra.mxu0 %v1343
        %v1345 = vpop.f32.mrf.mxu0
        %v1346 = vadd.f32 %v1315, %v1345
        %1347 = vdwg.mxu0
        %1348 = vmatpush.msra.mxu0 0.0
        %1349 = vmatpush.msra.mxu0 0.0
        %1350 = vmatpush.msra.mxu0 0.0
        %1351 = vmatpush.msra.mxu0 0.0
        %1352 = vmatpush.msra.mxu0 0.0
        %1353 = vmatpush.msra.mxu0 0.0
        %1354 = vmatpush.msra.mxu0 0.0
        %1355 = vmatpush.msra.mxu0 0.0
        %v1356 = vand.u32 %v1148, 4294901760
        %v1357 = vsub.f32 %v1148, %v1356
        %v1358 = vand.u32 %v1357, 4294901760
        %1359 = vmatpush.msra.mxu0 %v1358
        %v1360 = vand.u32 %v1147, 4294901760
        %v1361 = vsub.f32 %v1147, %v1360
        %v1362 = vand.u32 %v1361, 4294901760
        %1363 = vmatpush.msra.mxu0 %v1362
        %v1364 = vand.u32 %v1146, 4294901760
        %v1365 = vsub.f32 %v1146, %v1364
        %v1366 = vand.u32 %v1365, 4294901760
        %1367 = vmatpush.msra.mxu0 %v1366
        %v1368 = vand.u32 %v1145, 4294901760
        %v1369 = vsub.f32 %v1145, %v1368
        %v1370 = vand.u32 %v1369, 4294901760
        %1371 = vmatpush.msra.mxu0 %v1370
        %v1372 = vand.u32 %v1144, 4294901760
        %v1373 = vsub.f32 %v1144, %v1372
        %v1374 = vand.u32 %v1373, 4294901760
        %1375 = vmatpush.msra.mxu0 %v1374
        %v1376 = vand.u32 %v1143, 4294901760
        %v1377 = vsub.f32 %v1143, %v1376
        %v1378 = vand.u32 %v1377, 4294901760
        %1379 = vmatpush.msra.mxu0 %v1378
        %v1380 = vand.u32 %v1142, 4294901760
        %v1381 = vsub.f32 %v1142, %v1380
        %v1382 = vand.u32 %v1381, 4294901760
        %1383 = vmatpush.msra.mxu0 %v1382
        %v1384 = vand.u32 %v1141, 4294901760
        %v1385 = vsub.f32 %v1141, %v1384
        %v1386 = vand.u32 %v1385, 4294901760
        %1387 = vmatpush.msra.mxu0 %v1386
        %v1388 = vand.u32 %v1183, 4294901760
        %1389 = vmatmul.f32.gmra.mxu0 %v1388
        %v1390 = vpop.f32.mrf.mxu0
        %v1391 = vadd.f32 %v1346, %v1390
        %1392 = vdwg.mxu0
        %1393 = vmatpush.msra.mxu0 0.0
        %1394 = vmatpush.msra.mxu0 0.0
        %1395 = vmatpush.msra.mxu0 0.0
        %1396 = vmatpush.msra.mxu0 0.0
        %1397 = vmatpush.msra.mxu0 0.0
        %1398 = vmatpush.msra.mxu0 0.0
        %1399 = vmatpush.msra.mxu0 0.0
        %1400 = vmatpush.msra.mxu0 0.0
        %v1401 = vand.u32 %v1148, 4294901760
        %1402 = vmatpush.msra.mxu0 %v1401
        %v1403 = vand.u32 %v1147, 4294901760
        %1404 = vmatpush.msra.mxu0 %v1403
        %v1405 = vand.u32 %v1146, 4294901760
        %1406 = vmatpush.msra.mxu0 %v1405
        %v1407 = vand.u32 %v1145, 4294901760
        %1408 = vmatpush.msra.mxu0 %v1407
        %v1409 = vand.u32 %v1144, 4294901760
        %1410 = vmatpush.msra.mxu0 %v1409
        %v1411 = vand.u32 %v1143, 4294901760
        %1412 = vmatpush.msra.mxu0 %v1411
        %v1413 = vand.u32 %v1142, 4294901760
        %1414 = vmatpush.msra.mxu0 %v1413
        %v1415 = vand.u32 %v1141, 4294901760
        %1416 = vmatpush.msra.mxu0 %v1415
        %v1417 = vand.u32 %v1183, 4294901760
        %1418 = vmatmul.f32.gmra.mxu0 %v1417
        %v1419 = vpop.f32.mrf.mxu0
        %v1420 = vadd.f32 %v1391, %v1419
        %1421 = vdwg.mxu0
        %v1422 = vsub.f32 %v653, %v1420
        %v1423 = vmul.f32 %v1422, %v1422
        %v1424 = vrot.slane %v1423, 4
        %v1425 = vadd.f32 %v1423, %v1424
        %v1426 = vrot.slane %v1425, 2
        %v1427 = vadd.f32 %v1425, %v1426
        %v1428 = vrot.slane %v1427, 1
        %v1429 = vadd.f32 %v1427, %v1428
        %1430 = vst [vmem:[%s430] sm:$0x1] %v1429
        %1432 = vset.pattern.permute.xlu0 0
        %1433 = vperm.xlu0 %1432, %v457
        %v1434 = vpop.permute.xlu0 %1433
        %1437 = vset.pattern.permute.xlu0 0
        %1438 = vperm.xlu0 %1437, %v458
        %v1439 = vpop.permute.xlu0 %1438
        %1442 = vset.pattern.permute.xlu0 0
        %1443 = vperm.xlu0 %1442, %v459
        %v1444 = vpop.permute.xlu0 %1443
        %1447 = vset.pattern.permute.xlu0 0
        %1448 = vperm.xlu0 %1447, %v460
        %v1449 = vpop.permute.xlu0 %1448
        %v1452 = vsel %vm675, %v453, 0
        %v1455 = vsel %vm675, %v454, 0
        %v1458 = vsel %vm675, %v455, 0
        %v1461 = vsel %vm675, %v456, 0
        %1463 = vmatpush.msra.mxu0 0.0
        %1464 = vmatpush.msra.mxu0 0.0
        %1465 = vmatpush.msra.mxu0 0.0
        %1466 = vmatpush.msra.mxu0 0.0
        %1467 = vmatpush.msra.mxu0 0.0
        %1468 = vmatpush.msra.mxu0 0.0
        %1469 = vmatpush.msra.mxu0 0.0
        %1470 = vmatpush.msra.mxu0 0.0
        %1471 = vmatpush.msra.mxu0 0.0
        %1472 = vmatpush.msra.mxu0 0.0
        %1473 = vmatpush.msra.mxu0 0.0
        %1474 = vmatpush.msra.mxu0 0.0
        %1475 = vmatpush.msra.mxu0 0.0
        %1476 = vmatpush.msra.mxu0 0.0
        %1477 = vmatpush.msra.mxu0 0.0
        %v1478 = vand.u32 %v1420, 4294901760
        %1479 = vmatpush.msra.mxu0 %v1478
        %v1480 = vand.u32 %v1452, 4294901760
        %v1481 = vsub.f32 %v1452, %v1480
        %v1482 = vand.u32 %v1481, 4294901760
        %v1483 = vsub.f32 %v1481, %v1482
        %v1484 = vand.u32 %v1483, 4294901760
        %1485 = vmatmul.f32.gmra.mxu0 %v1484
        %v1486 = vpop.f32.mrf.mxu0
        %v1487 = vadd.f32 %v1434, %v1486
        %v1488 = vand.u32 %v1455, 4294901760
        %v1489 = vsub.f32 %v1455, %v1488
        %v1490 = vand.u32 %v1489, 4294901760
        %v1491 = vsub.f32 %v1489, %v1490
        %v1492 = vand.u32 %v1491, 4294901760
        %1493 = vmatmul.f32.gmra.mxu0 %v1492
        %v1494 = vpop.f32.mrf.mxu0
        %v1495 = vadd.f32 %v1439, %v1494
        %v1496 = vand.u32 %v1458, 4294901760
        %v1497 = vsub.f32 %v1458, %v1496
        %v1498 = vand.u32 %v1497, 4294901760
        %v1499 = vsub.f32 %v1497, %v1498
        %v1500 = vand.u32 %v1499, 4294901760
        %1501 = vmatmul.f32.gmra.mxu0 %v1500
        %v1502 = vpop.f32.mrf.mxu0
        %v1503 = vadd.f32 %v1444, %v1502
        %v1504 = vand.u32 %v1461, 4294901760
        %v1505 = vsub.f32 %v1461, %v1504
        %v1506 = vand.u32 %v1505, 4294901760
        %v1507 = vsub.f32 %v1505, %v1506
        %v1508 = vand.u32 %v1507, 4294901760
        %1509 = vmatmul.f32.gmra.mxu0 %v1508
        %v1510 = vpop.f32.mrf.mxu0
        %v1511 = vadd.f32 %v1449, %v1510
        %1512 = vdwg.mxu0
        %1513 = vmatpush.msra.mxu0 0.0
        %1514 = vmatpush.msra.mxu0 0.0
        %1515 = vmatpush.msra.mxu0 0.0
        %1516 = vmatpush.msra.mxu0 0.0
        %1517 = vmatpush.msra.mxu0 0.0
        %1518 = vmatpush.msra.mxu0 0.0
        %1519 = vmatpush.msra.mxu0 0.0
        %1520 = vmatpush.msra.mxu0 0.0
        %1521 = vmatpush.msra.mxu0 0.0
        %1522 = vmatpush.msra.mxu0 0.0
        %1523 = vmatpush.msra.mxu0 0.0
        %1524 = vmatpush.msra.mxu0 0.0
        %1525 = vmatpush.msra.mxu0 0.0
        %1526 = vmatpush.msra.mxu0 0.0
        %1527 = vmatpush.msra.mxu0 0.0
        %v1528 = vand.u32 %v1420, 4294901760
        %v1529 = vsub.f32 %v1420, %v1528
        %v1530 = vand.u32 %v1529, 4294901760
        %v1531 = vsub.f32 %v1529, %v1530
        %v1532 = vand.u32 %v1531, 4294901760
        %1533 = vmatpush.msra.mxu0 %v1532
        %v1534 = vand.u32 %v1452, 4294901760
        %1535 = vmatmul.f32.gmra.mxu0 %v1534
        %v1536 = vpop.f32.mrf.mxu0
        %v1537 = vadd.f32 %v1487, %v1536
        %v1538 = vand.u32 %v1455, 4294901760
        %1539 = vmatmul.f32.gmra.mxu0 %v1538
        %v1540 = vpop.f32.mrf.mxu0
        %v1541 = vadd.f32 %v1495, %v1540
        %v1542 = vand.u32 %v1458, 4294901760
        %1543 = vmatmul.f32.gmra.mxu0 %v1542
        %v1544 = vpop.f32.mrf.mxu0
        %v1545 = vadd.f32 %v1503, %v1544
        %v1546 = vand.u32 %v1461, 4294901760
        %1547 = vmatmul.f32.gmra.mxu0 %v1546
        %v1548 = vpop.f32.mrf.mxu0
        %v1549 = vadd.f32 %v1511, %v1548
        %1550 = vdwg.mxu0
        %1551 = vmatpush.msra.mxu0 0.0
        %1552 = vmatpush.msra.mxu0 0.0
        %1553 = vmatpush.msra.mxu0 0.0
        %1554 = vmatpush.msra.mxu0 0.0
        %1555 = vmatpush.msra.mxu0 0.0
        %1556 = vmatpush.msra.mxu0 0.0
        %1557 = vmatpush.msra.mxu0 0.0
        %1558 = vmatpush.msra.mxu0 0.0
        %1559 = vmatpush.msra.mxu0 0.0
        %1560 = vmatpush.msra.mxu0 0.0
        %1561 = vmatpush.msra.mxu0 0.0
        %1562 = vmatpush.msra.mxu0 0.0
        %1563 = vmatpush.msra.mxu0 0.0
        %1564 = vmatpush.msra.mxu0 0.0
        %1565 = vmatpush.msra.mxu0 0.0
        %v1566 = vand.u32 %v1420, 4294901760
        %v1567 = vsub.f32 %v1420, %v1566
        %1568 = vmatpush.msra.mxu0 %v1567
        %v1569 = vand.u32 %v1452, 4294901760
        %v1570 = vsub.f32 %v1452, %v1569
        %1571 = vmatmul.f32.gmra.mxu0 %v1570
        %v1572 = vpop.f32.mrf.mxu0
        %v1573 = vadd.f32 %v1537, %v1572
        %v1574 = vand.u32 %v1455, 4294901760
        %v1575 = vsub.f32 %v1455, %v1574
        %1576 = vmatmul.f32.gmra.mxu0 %v1575
        %v1577 = vpop.f32.mrf.mxu0
        %v1578 = vadd.f32 %v1541, %v1577
        %v1579 = vand.u32 %v1458, 4294901760
        %v1580 = vsub.f32 %v1458, %v1579
        %1581 = vmatmul.f32.gmra.mxu0 %v1580
        %v1582 = vpop.f32.mrf.mxu0
        %v1583 = vadd.f32 %v1545, %v1582
        %v1584 = vand.u32 %v1461, 4294901760
        %v1585 = vsub.f32 %v1461, %v1584
        %1586 = vmatmul.f32.gmra.mxu0 %v1585
        %v1587 = vpop.f32.mrf.mxu0
        %v1588 = vadd.f32 %v1549, %v1587
        %1589 = vdwg.mxu0
        %1590 = vmatpush.msra.mxu0 0.0
        %1591 = vmatpush.msra.mxu0 0.0
        %1592 = vmatpush.msra.mxu0 0.0
        %1593 = vmatpush.msra.mxu0 0.0
        %1594 = vmatpush.msra.mxu0 0.0
        %1595 = vmatpush.msra.mxu0 0.0
        %1596 = vmatpush.msra.mxu0 0.0
        %1597 = vmatpush.msra.mxu0 0.0
        %1598 = vmatpush.msra.mxu0 0.0
        %1599 = vmatpush.msra.mxu0 0.0
        %1600 = vmatpush.msra.mxu0 0.0
        %1601 = vmatpush.msra.mxu0 0.0
        %1602 = vmatpush.msra.mxu0 0.0
        %1603 = vmatpush.msra.mxu0 0.0
        %1604 = vmatpush.msra.mxu0 0.0
        %v1605 = vand.u32 %v1420, 4294901760
        %1606 = vmatpush.msra.mxu0 %v1605
        %v1607 = vand.u32 %v1452, 4294901760
        %v1608 = vsub.f32 %v1452, %v1607
        %v1609 = vand.u32 %v1608, 4294901760
        %1610 = vmatmul.f32.gmra.mxu0 %v1609
        %v1611 = vpop.f32.mrf.mxu0
        %v1612 = vadd.f32 %v1573, %v1611
        %v1613 = vand.u32 %v1455, 4294901760
        %v1614 = vsub.f32 %v1455, %v1613
        %v1615 = vand.u32 %v1614, 4294901760
        %1616 = vmatmul.f32.gmra.mxu0 %v1615
        %v1617 = vpop.f32.mrf.mxu0
        %v1618 = vadd.f32 %v1578, %v1617
        %v1619 = vand.u32 %v1458, 4294901760
        %v1620 = vsub.f32 %v1458, %v1619
        %v1621 = vand.u32 %v1620, 4294901760
        %1622 = vmatmul.f32.gmra.mxu0 %v1621
        %v1623 = vpop.f32.mrf.mxu0
        %v1624 = vadd.f32 %v1583, %v1623
        %v1625 = vand.u32 %v1461, 4294901760
        %v1626 = vsub.f32 %v1461, %v1625
        %v1627 = vand.u32 %v1626, 4294901760
        %1628 = vmatmul.f32.gmra.mxu0 %v1627
        %v1629 = vpop.f32.mrf.mxu0
        %v1630 = vadd.f32 %v1588, %v1629
        %1631 = vdwg.mxu0
        %1632 = vmatpush.msra.mxu0 0.0
        %1633 = vmatpush.msra.mxu0 0.0
        %1634 = vmatpush.msra.mxu0 0.0
        %1635 = vmatpush.msra.mxu0 0.0
        %1636 = vmatpush.msra.mxu0 0.0
        %1637 = vmatpush.msra.mxu0 0.0
        %1638 = vmatpush.msra.mxu0 0.0
        %1639 = vmatpush.msra.mxu0 0.0
        %1640 = vmatpush.msra.mxu0 0.0
        %1641 = vmatpush.msra.mxu0 0.0
        %1642 = vmatpush.msra.mxu0 0.0
        %1643 = vmatpush.msra.mxu0 0.0
        %1644 = vmatpush.msra.mxu0 0.0
        %1645 = vmatpush.msra.mxu0 0.0
        %1646 = vmatpush.msra.mxu0 0.0
        %v1647 = vand.u32 %v1420, 4294901760
        %v1648 = vsub.f32 %v1420, %v1647
        %v1649 = vand.u32 %v1648, 4294901760
        %1650 = vmatpush.msra.mxu0 %v1649
        %v1651 = vand.u32 %v1452, 4294901760
        %1652 = vmatmul.f32.gmra.mxu0 %v1651
        %v1653 = vpop.f32.mrf.mxu0
        %v1654 = vadd.f32 %v1612, %v1653
        %v1655 = vand.u32 %v1455, 4294901760
        %1656 = vmatmul.f32.gmra.mxu0 %v1655
        %v1657 = vpop.f32.mrf.mxu0
        %v1658 = vadd.f32 %v1618, %v1657
        %v1659 = vand.u32 %v1458, 4294901760
        %1660 = vmatmul.f32.gmra.mxu0 %v1659
        %v1661 = vpop.f32.mrf.mxu0
        %v1662 = vadd.f32 %v1624, %v1661
        %v1663 = vand.u32 %v1461, 4294901760
        %1664 = vmatmul.f32.gmra.mxu0 %v1663
        %v1665 = vpop.f32.mrf.mxu0
        %v1666 = vadd.f32 %v1630, %v1665
        %1667 = vdwg.mxu0
        %1668 = vmatpush.msra.mxu0 0.0
        %1669 = vmatpush.msra.mxu0 0.0
        %1670 = vmatpush.msra.mxu0 0.0
        %1671 = vmatpush.msra.mxu0 0.0
        %1672 = vmatpush.msra.mxu0 0.0
        %1673 = vmatpush.msra.mxu0 0.0
        %1674 = vmatpush.msra.mxu0 0.0
        %1675 = vmatpush.msra.mxu0 0.0
        %1676 = vmatpush.msra.mxu0 0.0
        %1677 = vmatpush.msra.mxu0 0.0
        %1678 = vmatpush.msra.mxu0 0.0
        %1679 = vmatpush.msra.mxu0 0.0
        %1680 = vmatpush.msra.mxu0 0.0
        %1681 = vmatpush.msra.mxu0 0.0
        %1682 = vmatpush.msra.mxu0 0.0
        %v1683 = vand.u32 %v1420, 4294901760
        %1684 = vmatpush.msra.mxu0 %v1683
        %v1685 = vand.u32 %v1452, 4294901760
        %1686 = vmatmul.f32.gmra.mxu0 %v1685
        %v1687 = vpop.f32.mrf.mxu0
        %v1688 = vadd.f32 %v1654, %v1687
        %v1689 = vand.u32 %v1455, 4294901760
        %1690 = vmatmul.f32.gmra.mxu0 %v1689
        %v1691 = vpop.f32.mrf.mxu0
        %v1692 = vadd.f32 %v1658, %v1691
        %v1693 = vand.u32 %v1458, 4294901760
        %1694 = vmatmul.f32.gmra.mxu0 %v1693
        %v1695 = vpop.f32.mrf.mxu0
        %v1696 = vadd.f32 %v1662, %v1695
        %v1697 = vand.u32 %v1461, 4294901760
        %1698 = vmatmul.f32.gmra.mxu0 %v1697
        %v1699 = vpop.f32.mrf.mxu0
        %v1700 = vadd.f32 %v1666, %v1699
        %1701 = vdwg.mxu0
        %1702 = vst [vmem:[%s411] sm:$0xff] %v1688
        %1703 = vst [vmem:[%s411 + $0x8] sm:$0xff] %v1692
        %1704 = vst [vmem:[%s411 + $0x10] sm:$0xff] %v1696
        %1705 = vst [vmem:[%s411 + $0x18] sm:$0xff] %v1700
        %s1706 = sand.u32 %s191, 1
        %s1707 = scalar_lea.sflag [#allocation4], %s1706
        %s1708 = sand.u32 %s191, 1
        %s1709 = smul.addr %s1708, 32
        %s1710 = scalar_lea.vmem [#allocation3], %s1709
        %s1711 = sand.u32 %s31, 1
        %s1712 = scalar_lea.sflag [#allocation6], %s1711
        %s1713 = sand.u32 %s217, 1
        %s1714 = scalar_lea.vmem [#allocation5], %s1713
        %s1715 = sand.u32 %s31, 1
        %s1716 = scalar_lea.sflag [#allocation6], %s1715
        %s1717 = sand.u32 %s243, 1
        %s1718 = smul.addr %s1717, 8
        %s1719 = scalar_lea.vmem [#allocation7], %s1718
        %s1720 = sand.u32 %s269, 1
        %s1721 = scalar_lea.sflag [#allocation9], %s1720
        %s1722 = sand.u32 %s269, 1
        %s1723 = scalar_lea.vmem [#allocation8], %s1722
        // Predicated region
        $region87: #{tpu_custom_call.1} parent=81 // pred_check
          %p1724 = pneg %p201
        $region88: #{tpu_custom_call.1} parent=81 // pred_check_branch
          %1726 = sbr.rel (%p1724) target = $region90
        $region89: #{tpu_custom_call.1} parent=81 // pred_region
          %1728 = vsyncadd %s1707, 0
          %s1729 = smul.addr %s31, 8
          %s1730 = scalar_lea.hbm %s7, %s1729
          %s1731 = sshll.u32 %s1710, 4
          %s1732 = int_to_ptr.vmem [resolvable:$true] %s1731
          %s1733 = sshll.u32 %s1730, 4
          %s1734 = int_to_ptr.hbm [resolvable:$true] %s1733
          %1739 = dma.vmem_to_hbm [thread:$0]  %s1732, 512, %s1734, %s1707, 128, 256, 8
        $region90: #{tpu_custom_call.1} parent=81 // pred_fallthru
          _
        // Predicated region
        $region91: #{tpu_custom_call.1} parent=81 // pred_check
          %p1740 = pneg %p227
        $region92: #{tpu_custom_call.1} parent=81 // pred_check_branch
          %1742 = sbr.rel (%p1740) target = $region94
        $region93: #{tpu_custom_call.1} parent=81 // pred_region
          %1744 = vsyncadd %s1712, 0
          %s1745 = scalar_lea.hbm %s8, %s31
          %s1747 = sshll.u32 %s1714, 4
          %s1748 = int_to_ptr.vmem [resolvable:$true] %s1747
          %s1749 = sshll.u32 %s1745, 4
          %s1750 = int_to_ptr.hbm [resolvable:$true] %s1749
          %1752 = dma.vmem_to_hbm [thread:$0]  %s1748, 16, %s1750, %s1712
        $region94: #{tpu_custom_call.1} parent=81 // pred_fallthru
          _
        // Predicated region
        $region95: #{tpu_custom_call.1} parent=81 // pred_check
          %p1753 = pneg %p253
        $region96: #{tpu_custom_call.1} parent=81 // pred_check_branch
          %1755 = sbr.rel (%p1753) target = $region98
        $region97: #{tpu_custom_call.1} parent=81 // pred_region
          %1757 = vsyncadd %s1716, 0
          %s1758 = smul.addr %s31, 8
          %s1759 = scalar_lea.hbm %s9, %s1758
          %s1761 = sshll.u32 %s1719, 4
          %s1762 = int_to_ptr.vmem [resolvable:$true] %s1761
          %s1763 = sshll.u32 %s1759, 4
          %s1764 = int_to_ptr.hbm [resolvable:$true] %s1763
          %1766 = dma.vmem_to_hbm [thread:$0]  %s1762, 128, %s1764, %s1716
        $region98: #{tpu_custom_call.1} parent=81 // pred_fallthru
          _
        // Predicated region
        $region99: #{tpu_custom_call.1} parent=81 // pred_check
          %p1767 = pneg %p279
        $region100: #{tpu_custom_call.1} parent=81 // pred_check_branch
          %1769 = sbr.rel (%p1767) target = $region102
        $region101: #{tpu_custom_call.1} parent=81 // pred_region
          %1771 = vsyncadd %s1721, 0
          %s1772 = scalar_lea.hbm %s10, %s31
          %s1774 = sshll.u32 %s1723, 4
          %s1775 = int_to_ptr.vmem [resolvable:$true] %s1774
          %s1776 = sshll.u32 %s1772, 4
          %s1777 = int_to_ptr.hbm [resolvable:$true] %s1776
          %1779 = dma.vmem_to_hbm [thread:$0]  %s1775, 16, %s1777, %s1721
        $region102: #{tpu_custom_call.1} parent=81 // pred_fallthru
          _
      $region82: #{tpu_custom_call.1} parent=5 // pred_fallthru
        _
      %p1780 = scmp.le.s32.totalorder 2, %s26
      // Predicated region
      $region103: #{tpu_custom_call.1} parent=5 // pred_check
        %p1781 = pneg %p1780
      $region104: #{tpu_custom_call.1} parent=5 // pred_check_branch
        %1783 = sbr.rel (%p1781) target = $region106
      $region105: #{tpu_custom_call.1} parent=5 // pred_region
        %s1784 = ssub.s32 %s26, 2
        // Predicated region
        $region107: #{tpu_custom_call.1} parent=105 // pred_check
          %p1785 = pneg %p207
        $region108: #{tpu_custom_call.1} parent=105 // pred_check_branch
          %1787 = sbr.rel (%p1785) target = $region110
        $region109: #{tpu_custom_call.1} parent=105 // pred_region
          %s1788 = sand.u32 %s192, 1
          %s1789 = scalar_lea.sflag [#allocation4], %s1788
          %s1790 = sand.u32 %s192, 1
          %s1791 = smul.addr %s1790, 32
          %s1792 = scalar_lea.vmem [#allocation3], %s1791
          %1794 = dma.done %s1789, 512
        $region110: #{tpu_custom_call.1} parent=105 // pred_fallthru
          _
        // Predicated region
        $region111: #{tpu_custom_call.1} parent=105 // pred_check
          %p1795 = pneg %p233
        $region112: #{tpu_custom_call.1} parent=105 // pred_check_branch
          %1797 = sbr.rel (%p1795) target = $region114
        $region113: #{tpu_custom_call.1} parent=105 // pred_region
          %s1798 = sand.u32 %s32, 1
          %s1799 = scalar_lea.sflag [#allocation6], %s1798
          %s1800 = sand.u32 %s218, 1
          %s1801 = scalar_lea.vmem [#allocation5], %s1800
          %1803 = dma.done %s1799, 16
        $region114: #{tpu_custom_call.1} parent=105 // pred_fallthru
          _
        // Predicated region
        $region115: #{tpu_custom_call.1} parent=105 // pred_check
          %p1804 = pneg %p259
        $region116: #{tpu_custom_call.1} parent=105 // pred_check_branch
          %1806 = sbr.rel (%p1804) target = $region118
        $region117: #{tpu_custom_call.1} parent=105 // pred_region
          %s1807 = sand.u32 %s32, 1
          %s1808 = scalar_lea.sflag [#allocation6], %s1807
          %s1809 = sand.u32 %s244, 1
          %s1810 = smul.addr %s1809, 8
          %s1811 = scalar_lea.vmem [#allocation7], %s1810
          %1813 = dma.done %s1808, 128
        $region118: #{tpu_custom_call.1} parent=105 // pred_fallthru
          _
        // Predicated region
        $region119: #{tpu_custom_call.1} parent=105 // pred_check
          %p1814 = pneg %p285
        $region120: #{tpu_custom_call.1} parent=105 // pred_check_branch
          %1816 = sbr.rel (%p1814) target = $region122
        $region121: #{tpu_custom_call.1} parent=105 // pred_region
          %s1817 = sand.u32 %s270, 1
          %s1818 = scalar_lea.sflag [#allocation9], %s1817
          %s1819 = sand.u32 %s270, 1
          %s1820 = scalar_lea.vmem [#allocation8], %s1819
          %1822 = dma.done %s1818, 16
        $region122: #{tpu_custom_call.1} parent=105 // pred_fallthru
          _
      $region106: #{tpu_custom_call.1} parent=5 // pred_fallthru
        _
    $region6: #{tpu_custom_call.1} parent=1 // loop_footer
      %s30 = sadd.s32 1, %s26
    $region7: #{tpu_custom_call.1} parent=1 // loop_footer_branch
      %25 = sbr.rel target = $region3
    $region8: #{tpu_custom_call.1} parent=1 // loop_exit
      _
    %1823 = vsyncpa [#allocation4], 1
    %s1824 = scalar_lea.sflag [#allocation4], 1
    %1825 = vsyncpa %s1824, 1
    %1826 = vsyncpa [#allocation6], 1
    %s1827 = scalar_lea.sflag [#allocation6], 1
    %1828 = vsyncpa %s1827, 1
    %1829 = vsyncpa [#allocation9], 1
    %s1830 = scalar_lea.sflag [#allocation9], 1
    %1831 = vsyncpa %s1830, 1

</llo_original>
